<compile_context>
chip_gen: v6e
topology: v6e:2x2x1
jax: 0.10.0
libtpu: 0.0.40
codegen_flags: <defaults>
</compile_context>

<pallas_src>
import functools

import jax
import jax.numpy as jnp
from jax import lax
from jax.experimental import pallas as pl
from jax.experimental.pallas import tpu as pltpu


def _layer_norm(x, gamma, beta, eps=1e-5):
    # PyTorch nn.LayerNorm: biased variance over the last dim, computed in f32.
    mu = jnp.mean(x, axis=-1, keepdims=True)
    var = jnp.mean((x - mu) ** 2, axis=-1, keepdims=True)
    inv = lax.rsqrt(var + eps)
    return (x - mu) * inv * gamma + beta


def _block_kernel(
    xq_ref,                   # (TQ, C)  query-row tile of x
    xkv_ref,                  # (T,  C)  full sequence (for K/V), constant across query tiles
    g1_ref, b1_ref,           # (1, C)   LayerNorm1 gamma/beta (f32)
    g2_ref, b2_ref,           # (1, C)   LayerNorm2 gamma/beta (f32)
    wq_ref,                   # (C, C)   fused per-head query projections (bf16)
    wkv_ref,                  # (C, 2C)  fused [K | V] projections (bf16)
    w1_ref, fb1_ref,          # (C, 4C) bf16, (1, 4C) f32
    w2_ref, fb2_ref,          # (4C, C) bf16, (1, C)  f32
    o_ref,                    # (TQ, C)
    kv_scr,                   # VMEM (T, 2C)  — K|V cache for the full sequence (per batch elem)
    sa_scr,                   # VMEM (TQ, C) f32 — attention-output slab (heads write columns)
    *, n_head, n_embd, q_tile,
):
    H, C = n_head, n_embd
    hs = C // H
    TQ = q_tile
    qi = pl.program_id(1)
    T = xkv_ref.shape[0]
    scale = float(C) ** -0.5        # module scales by n_embd, not head_size (intentional)

    # ---- K/V for the whole sequence, once per batch element (query tile 0) ----
    @pl.when(qi == 0)
    def _():
        xf = xkv_ref[...].astype(jnp.float32)                       # (T, C)
        ln1f = _layer_norm(xf, g1_ref[0, :], b1_ref[0, :])
        kv = jnp.dot(ln1f.astype(wkv_ref.dtype), wkv_ref[...],      # one lane-dense (T,C)x(C,2C)
                     preferred_element_type=jnp.float32)
        kv_scr[...] = kv.astype(kv_scr.dtype)

    # ---- queries for this tile (fused across heads: one (TQ,C)x(C,C) matmul) ----
    xq = xq_ref[...].astype(jnp.float32)                            # (TQ, C)
    ln1q = _layer_norm(xq, g1_ref[0, :], b1_ref[0, :])
    q = jnp.dot(ln1q.astype(wq_ref.dtype), wq_ref[...],
                preferred_element_type=jnp.float32) * scale          # (TQ, C) f32
    q = q.astype(wq_ref.dtype)                                       # bf16 for MXU

    # ---- causal mask for this tile, built once and shared by all heads ----
    row = qi * TQ + lax.broadcasted_iota(jnp.int32, (TQ, T), 0)      # global query index
    col = lax.broadcasted_iota(jnp.int32, (TQ, T), 1)                # key index
    causal = row >= col
    neg_inf = jnp.float32(-jnp.inf)

    # Contract the minor dims of q and k: q @ k^T with no explicit transpose.
    nt_dims = (((1,), (1,)), ((), ()))

    # ---- per-head attention core; outputs land in the (TQ, C) scratch slab ----
    # TODO(synk): for long sequences, tile K/V here too with a flash-style online
    # softmax; at these sizes the (TQ, T) scores fit comfortably in VMEM.
    for h in range(H):
        lo = h * hs
        qh = q[:, lo:lo + hs]                                        # (TQ, hs)
        kh = kv_scr[:, lo:lo + hs]                                   # (T,  hs) bf16
        vh = kv_scr[:, C + lo:C + lo + hs]                           # (T,  hs) bf16

        s = lax.dot_general(qh, kh, dimension_numbers=nt_dims,
                            preferred_element_type=jnp.float32)      # (TQ, T)
        s = jnp.where(causal, s, neg_inf)

        m = jnp.max(s, axis=-1, keepdims=True)
        p = jnp.exp(s - m)
        denom = jnp.sum(p, axis=-1, keepdims=True)
        attn = p * pl.reciprocal(denom, approx=True)                 # EUP, not VALU divide

        sa_scr[:, lo:lo + hs] = jnp.dot(attn.astype(vh.dtype), vh,
                                        preferred_element_type=jnp.float32)

    x1 = xq + sa_scr[...]                                            # (TQ, C) f32 residual

    # ---- LN2 + feed-forward (Linear -> ReLU -> Linear) on the query tile ----
    ln2 = _layer_norm(x1, g2_ref[0, :], b2_ref[0, :])
    hdn = jnp.dot(ln2.astype(w1_ref.dtype), w1_ref[...],
                  preferred_element_type=jnp.float32) + fb1_ref[0, :]
    hdn = jnp.maximum(hdn, 0.0)
    ffn = jnp.dot(hdn.astype(w2_ref.dtype), w2_ref[...],
                  preferred_element_type=jnp.float32) + fb2_ref[0, :]

    o_ref[...] = (x1 + ffn).astype(o_ref.dtype)


def fuse_params(params, compute_dtype=jnp.bfloat16):
    """Fuse per-head (H, C, hs) projections into lane-dense weights; cast matmul weights."""
    H, C, hs = params["wq"].shape

    def to_cols(w):  # (H, C, hs) -> (C, H*hs): heads concatenated along output columns
        return jnp.transpose(w, (1, 0, 2)).reshape(C, H * hs)

    return {
        "ln1_g": params["ln1_g"], "ln1_b": params["ln1_b"],
        "ln2_g": params["ln2_g"], "ln2_b": params["ln2_b"],
        "w_q": to_cols(params["wq"]).astype(compute_dtype),                       # (C, C)
        "w_kv": jnp.concatenate([to_cols(params["wk"]), to_cols(params["wv"])],
                                axis=1).astype(compute_dtype),                    # (C, 2C)
        "w1": params["w1"].astype(compute_dtype), "b1": params["b1"],
        "w2": params["w2"].astype(compute_dtype), "b2": params["b2"],
    }


def block_forward(x, fused, *, n_head, q_tile=None):
    B, T, C = x.shape
    hid = fused["w1"].shape[1]
    if q_tile is None:
        q_tile = T if T <= 128 else 128
    assert T % q_tile == 0, "T must be divisible by q_tile"
    NQ = T // q_tile
    compute_dtype = fused["w_q"].dtype

    kernel = functools.partial(_block_kernel, n_head=n_head, n_embd=C, q_tile=q_tile)

    c2 = lambda b, q: (0, 0)   # constant-index weights: fetched once, no per-step re-DMA

    return pl.pallas_call(
        kernel,
        out_shape=jax.ShapeDtypeStruct((B, T, C), x.dtype),
        grid_spec=pltpu.PrefetchScalarGridSpec(
            num_scalar_prefetch=0,
            grid=(B, NQ),
            in_specs=[
                pl.BlockSpec((None, q_tile, C), lambda b, q: (b, q, 0)),   # x (query rows)
                pl.BlockSpec((None, T, C), lambda b, q: (b, 0, 0)),        # x (full seq for K/V)
                pl.BlockSpec((1, C), c2),                                  # ln1 gamma
                pl.BlockSpec((1, C), c2),                                  # ln1 beta
                pl.BlockSpec((1, C), c2),                                  # ln2 gamma
                pl.BlockSpec((1, C), c2),                                  # ln2 beta
                pl.BlockSpec((C, C), c2),                                  # fused W_q
                pl.BlockSpec((C, 2 * C), c2),                              # fused W_kv
                pl.BlockSpec((C, hid), c2),                                # ffn W1
                pl.BlockSpec((1, hid), c2),                                # ffn b1
                pl.BlockSpec((hid, C), c2),                                # ffn W2
                pl.BlockSpec((1, C), c2),                                  # ffn b2
            ],
            out_specs=pl.BlockSpec((None, q_tile, C), lambda b, q: (b, q, 0)),
            scratch_shapes=[
                pltpu.VMEM((T, 2 * C), compute_dtype),    # K|V cache (persists across query tiles)
                pltpu.VMEM((q_tile, C), jnp.float32),     # attention-output slab
            ],
        ),
        compiler_params=pltpu.CompilerParams(
            # batch axis parallel (megacore / 2-TC on v7x); query-tile axis arbitrary
            # because the K/V scratch is filled at tile 0 and reused by later tiles.
            dimension_semantics=("parallel", "arbitrary"),
            vmem_limit_bytes=64 * 1024 * 1024,
        ),
    )(
        x, x,
        fused["ln1_g"], fused["ln1_b"], fused["ln2_g"], fused["ln2_b"],
        fused["w_q"], fused["w_kv"],
        fused["w1"], fused["b1"], fused["w2"], fused["b2"],
    )


def reference_forward(x, params, *, n_head):
    """Pure-JAX f32 reference mirroring the PyTorch module, for verification."""
    B, T, C = x.shape

    def ln(x, g, b):
        mu = jnp.mean(x, axis=-1, keepdims=True)
        var = jnp.mean((x - mu) ** 2, axis=-1, keepdims=True)
        return (x - mu) * lax.rsqrt(var + 1e-5) * g[0] + b[0]

    ln1 = ln(x, params["ln1_g"], params["ln1_b"])
    scale = C ** -0.5
    mask = jnp.tril(jnp.ones((T, T), dtype=bool))
    outs = []
    for h in range(n_head):
        q = ln1 @ params["wq"][h]
        k = ln1 @ params["wk"][h]
        v = ln1 @ params["wv"][h]
        s = jnp.einsum("btd,bsd->bts", q, k) * scale
        s = jnp.where(mask, s, -jnp.inf)
        p = jax.nn.softmax(s, axis=-1)
        outs.append(jnp.einsum("bts,bsd->btd", p, v))
    x1 = x + jnp.concatenate(outs, axis=-1)
    ln2 = ln(x1, params["ln2_g"], params["ln2_b"])
    ffn = jnp.maximum(ln2 @ params["w1"] + params["b1"][0], 0.0) @ params["w2"] + params["b2"][0]
    return x1 + ffn


def init_params(key, n_embd, n_head):
    hs = n_embd // n_head
    hid = 4 * n_embd
    ks = jax.random.split(key, 8)
    s = 0.02
    return {
        "ln1_g": jnp.ones((1, n_embd), jnp.float32) + 0.1 * jax.random.normal(ks[0], (1, n_embd)),
        "ln1_b": 0.1 * jax.random.normal(ks[1], (1, n_embd)),
        "ln2_g": jnp.ones((1, n_embd), jnp.float32) + 0.1 * jax.random.normal(ks[2], (1, n_embd)),
        "ln2_b": 0.1 * jax.random.normal(ks[3], (1, n_embd)),
        "wq": s * jax.random.normal(ks[4], (n_head, n_embd, hs), jnp.float32),
        "wk": s * jax.random.normal(ks[5], (n_head, n_embd, hs), jnp.float32),
        "wv": s * jax.random.normal(ks[6], (n_head, n_embd, hs), jnp.float32),
        "w1": s * jax.random.normal(ks[7], (n_embd, hid), jnp.float32),
        "b1": jnp.zeros((1, hid), jnp.float32) + 0.01,
        "w2": s * jax.random.normal(jax.random.fold_in(key, 99), (hid, n_embd), jnp.float32),
        "b2": jnp.zeros((1, n_embd), jnp.float32) + 0.01,
    }


if __name__ == "__main__":
    key = jax.random.PRNGKey(0)

    # ---- Config 1: single query tile (NQ == 1), toy shapes --------------------
    B, T, C, H = 2, 8, 32, 4   # batch, block_size (seq), n_embd, n_head
    kx, kp = jax.random.split(key)
    x = jax.random.normal(kx, (B, T, C), jnp.float32)
    params = init_params(kp, C, H)
    ref = reference_forward(x, params, n_head=H)

    # f32-weight path: tight semantic check (only the approx reciprocal differs from exact math).
    out32 = jax.block_until_ready(block_forward(x, fuse_params(params, jnp.float32), n_head=H))
    assert out32.shape == (B, T, C)
    assert jnp.allclose(out32, ref, atol=5e-3, rtol=5e-3), float(jnp.max(jnp.abs(out32 - ref)))

    # bf16-MXU path (the optimized configuration): looser tolerance for bf16 rounding.
    out16 = jax.block_until_ready(block_forward(x, fuse_params(params, jnp.bfloat16), n_head=H))
    assert out16.shape == (B, T, C)
    assert jnp.allclose(out16, ref, atol=2e-2, rtol=2e-2), float(jnp.max(jnp.abs(out16 - ref)))

    # ---- Config 2: multiple query tiles (T > q_tile) ---------------------------
    # Exercises the K/V-scratch reuse path (qi > 0) and the causal mask offsets.
    B2, T2, q_tile2 = 2, 16, 8
    kx2, kp2 = jax.random.split(jax.random.fold_in(key, 1))
    x2 = jax.random.normal(kx2, (B2, T2, C), jnp.float32)
    params2 = init_params(kp2, C, H)
    ref2 = reference_forward(x2, params2, n_head=H)

    out32b = jax.block_until_ready(
        block_forward(x2, fuse_params(params2, jnp.float32), n_head=H, q_tile=q_tile2))
    assert out32b.shape == (B2, T2, C)
    assert jnp.allclose(out32b, ref2, atol=5e-3, rtol=5e-3), float(jnp.max(jnp.abs(out32b - ref2)))

    out16b = jax.block_until_ready(
        block_forward(x2, fuse_params(params2, jnp.bfloat16), n_head=H, q_tile=q_tile2))
    assert out16b.shape == (B2, T2, C)
    assert jnp.allclose(out16b, ref2, atol=2e-2, rtol=2e-2), float(jnp.max(jnp.abs(out16b - ref2)))

    print("KERNEL_OK")
</pallas_src>

<mosaic_0001>
module attributes {stable_mosaic.version = 11 : i64} {
  func.func @_block_kernel(%arg0: i32, %arg1: i32, %arg2: memref<1x8x32xf32, #tpu.memory_space<vmem>>, %arg3: memref<1x8x32xf32, #tpu.memory_space<vmem>>, %arg4: memref<1x32xf32, #tpu.memory_space<vmem>>, %arg5: memref<1x32xf32, #tpu.memory_space<vmem>>, %arg6: memref<1x32xf32, #tpu.memory_space<vmem>>, %arg7: memref<1x32xf32, #tpu.memory_space<vmem>>, %arg8: memref<32x32xf32, #tpu.memory_space<vmem>>, %arg9: memref<32x64xf32, #tpu.memory_space<vmem>>, %arg10: memref<32x128xf32, #tpu.memory_space<vmem>>, %arg11: memref<1x128xf32, #tpu.memory_space<vmem>>, %arg12: memref<128x32xf32, #tpu.memory_space<vmem>>, %arg13: memref<1x32xf32, #tpu.memory_space<vmem>>, %arg14: memref<1x8x32xf32, #tpu.memory_space<vmem>>, %arg15: memref<8x64xf32, #tpu.memory_space<vmem>>, %arg16: memref<8x32xf32, #tpu.memory_space<vmem>>) attributes {dimension_semantics = [#tpu.dimension_semantics<parallel>, #tpu.dimension_semantics<arbitrary>], iteration_bounds = array<i64: 2, 1>, scalar_prefetch = 0 : i64, scratch_operands = 2 : i64, tpu.core_type = #tpu.core_type<tc>, window_params = [{transform_indices = @transform_0, window_bounds = array<i64: 1, 8, 32>}, {transform_indices = @transform_1, window_bounds = array<i64: 1, 8, 32>}, {pipeline_mode = #tpu.pipeline_mode<synchronous>, transform_indices = @transform_2, window_bounds = array<i64: 1, 32>}, {pipeline_mode = #tpu.pipeline_mode<synchronous>, transform_indices = @transform_3, window_bounds = array<i64: 1, 32>}, {pipeline_mode = #tpu.pipeline_mode<synchronous>, transform_indices = @transform_4, window_bounds = array<i64: 1, 32>}, {pipeline_mode = #tpu.pipeline_mode<synchronous>, transform_indices = @transform_5, window_bounds = array<i64: 1, 32>}, {pipeline_mode = #tpu.pipeline_mode<synchronous>, transform_indices = @transform_6, window_bounds = array<i64: 32, 32>}, {pipeline_mode = #tpu.pipeline_mode<synchronous>, transform_indices = @transform_7, window_bounds = array<i64: 32, 64>}, {pipeline_mode = #tpu.pipeline_mode<synchronous>, transform_indices = @transform_8, window_bounds = array<i64: 32, 128>}, {pipeline_mode = #tpu.pipeline_mode<synchronous>, transform_indices = @transform_9, window_bounds = array<i64: 1, 128>}, {pipeline_mode = #tpu.pipeline_mode<synchronous>, transform_indices = @transform_10, window_bounds = array<i64: 128, 32>}, {pipeline_mode = #tpu.pipeline_mode<synchronous>, transform_indices = @transform_11, window_bounds = array<i64: 1, 32>}, {transform_indices = @transform_12, window_bounds = array<i64: 1, 8, 32>}]} {
    %c0_i32 = arith.constant 0 : i32
    %0 = arith.cmpi eq, %arg1, %c0_i32 : i32
    %1 = arith.extui %0 : i1 to i32
    %c0_i32_0 = arith.constant 0 : i32
    %2 = arith.cmpi ne, %1, %c0_i32_0 : i32
    scf.if %2 {
      %c0_77 = arith.constant 0 : index
      %c0_78 = arith.constant 0 : index
      %c0_79 = arith.constant 0 : index
      %165 = vector.load %arg3[%c0_77, %c0_78, %c0_79] : memref<1x8x32xf32, #tpu.memory_space<vmem>>, vector<1x8x32xf32>
      %166 = vector.shape_cast %165 : vector<1x8x32xf32> to vector<8x32xf32>
      %c0_80 = arith.constant 0 : index
      %c0_81 = arith.constant 0 : index
      %167 = vector.load %arg4[%c0_80, %c0_81] : memref<1x32xf32, #tpu.memory_space<vmem>>, vector<1x32xf32>
      %168 = vector.shape_cast %167 : vector<1x32xf32> to vector<32xf32>
      %c0_82 = arith.constant 0 : index
      %c0_83 = arith.constant 0 : index
      %169 = vector.load %arg5[%c0_82, %c0_83] : memref<1x32xf32, #tpu.memory_space<vmem>>, vector<1x32xf32>
      %170 = vector.shape_cast %169 : vector<1x32xf32> to vector<32xf32>
      %cst_84 = arith.constant dense<0.000000e+00> : vector<8xf32>
      %171 = vector.multi_reduction <add>, %166, %cst_84 [1] : vector<8x32xf32> to vector<8xf32>
      %172 = vector.shape_cast %171 : vector<8xf32> to vector<8x1xf32>
      %cst_85 = arith.constant 3.200000e+01 : f32
      %173 = vector.broadcast %cst_85 : f32 to vector<8x1xf32>
      %174 = arith.divf %172, %173 : vector<8x1xf32>
      %175 = vector.broadcast %174 : vector<8x1xf32> to vector<8x32xf32>
      %176 = arith.subf %166, %175 : vector<8x32xf32>
      %177 = arith.mulf %176, %176 : vector<8x32xf32>
      %cst_86 = arith.constant dense<0.000000e+00> : vector<8xf32>
      %178 = vector.multi_reduction <add>, %177, %cst_86 [1] : vector<8x32xf32> to vector<8xf32>
      %179 = vector.shape_cast %178 : vector<8xf32> to vector<8x1xf32>
      %cst_87 = arith.constant 3.200000e+01 : f32
      %180 = vector.broadcast %cst_87 : f32 to vector<8x1xf32>
      %181 = arith.divf %179, %180 : vector<8x1xf32>
      %cst_88 = arith.constant 9.99999974E-6 : f32
      %182 = vector.broadcast %cst_88 : f32 to vector<8x1xf32>
      %183 = arith.addf %181, %182 : vector<8x1xf32>
      %184 = math.rsqrt %183 : vector<8x1xf32>
      %185 = vector.broadcast %174 : vector<8x1xf32> to vector<8x32xf32>
      %186 = arith.subf %166, %185 : vector<8x32xf32>
      %187 = vector.broadcast %184 : vector<8x1xf32> to vector<8x32xf32>
      %188 = arith.mulf %186, %187 : vector<8x32xf32>
      %189 = vector.shape_cast %168 : vector<32xf32> to vector<1x32xf32>
      %190 = vector.broadcast %189 : vector<1x32xf32> to vector<8x32xf32>
      %191 = arith.mulf %188, %190 : vector<8x32xf32>
      %192 = vector.shape_cast %170 : vector<32xf32> to vector<1x32xf32>
      %193 = vector.broadcast %192 : vector<1x32xf32> to vector<8x32xf32>
      %194 = arith.addf %191, %193 : vector<8x32xf32>
      %c0_89 = arith.constant 0 : index
      %c0_90 = arith.constant 0 : index
      %195 = vector.load %arg9[%c0_89, %c0_90] : memref<32x64xf32, #tpu.memory_space<vmem>>, vector<32x64xf32>
      %cst_91 = arith.constant dense<0.000000e+00> : vector<8x64xf32>
      %196 = tpu.matmul %194, %195, %cst_91 {dimension_numbers = #tpu.dot_dimension_numbers<[1], [0], [0], [1], [0, 0, 1, 1], [], []>} : vector<8x32xf32>, vector<32x64xf32>, vector<8x64xf32> -> vector<8x64xf32>
      %c0_92 = arith.constant 0 : index
      %c0_93 = arith.constant 0 : index
      %197 = vector.load %arg15[%c0_92, %c0_93] : memref<8x64xf32, #tpu.memory_space<vmem>>, vector<8x64xf32>
      tpu.vector_store %arg15[%c0_92, %c0_93], %196 {strides = array<i32>} : memref<8x64xf32, #tpu.memory_space<vmem>>, vector<8x64xf32>,
    } else {
    }
    %c0 = arith.constant 0 : index
    %c0_1 = arith.constant 0 : index
    %c0_2 = arith.constant 0 : index
    %3 = vector.load %arg2[%c0, %c0_1, %c0_2] : memref<1x8x32xf32, #tpu.memory_space<vmem>>, vector<1x8x32xf32>
    %4 = vector.shape_cast %3 : vector<1x8x32xf32> to vector<8x32xf32>
    %c0_3 = arith.constant 0 : index
    %c0_4 = arith.constant 0 : index
    %5 = vector.load %arg4[%c0_3, %c0_4] : memref<1x32xf32, #tpu.memory_space<vmem>>, vector<1x32xf32>
    %6 = vector.shape_cast %5 : vector<1x32xf32> to vector<32xf32>
    %c0_5 = arith.constant 0 : index
    %c0_6 = arith.constant 0 : index
    %7 = vector.load %arg5[%c0_5, %c0_6] : memref<1x32xf32, #tpu.memory_space<vmem>>, vector<1x32xf32>
    %8 = vector.shape_cast %7 : vector<1x32xf32> to vector<32xf32>
    %cst = arith.constant dense<0.000000e+00> : vector<8xf32>
    %9 = vector.multi_reduction <add>, %4, %cst [1] : vector<8x32xf32> to vector<8xf32>
    %10 = vector.shape_cast %9 : vector<8xf32> to vector<8x1xf32>
    %cst_7 = arith.constant 3.200000e+01 : f32
    %11 = vector.broadcast %cst_7 : f32 to vector<8x1xf32>
    %12 = arith.divf %10, %11 : vector<8x1xf32>
    %13 = vector.broadcast %12 : vector<8x1xf32> to vector<8x32xf32>
    %14 = arith.subf %4, %13 : vector<8x32xf32>
    %15 = arith.mulf %14, %14 : vector<8x32xf32>
    %cst_8 = arith.constant dense<0.000000e+00> : vector<8xf32>
    %16 = vector.multi_reduction <add>, %15, %cst_8 [1] : vector<8x32xf32> to vector<8xf32>
    %17 = vector.shape_cast %16 : vector<8xf32> to vector<8x1xf32>
    %cst_9 = arith.constant 3.200000e+01 : f32
    %18 = vector.broadcast %cst_9 : f32 to vector<8x1xf32>
    %19 = arith.divf %17, %18 : vector<8x1xf32>
    %cst_10 = arith.constant 9.99999974E-6 : f32
    %20 = vector.broadcast %cst_10 : f32 to vector<8x1xf32>
    %21 = arith.addf %19, %20 : vector<8x1xf32>
    %22 = math.rsqrt %21 : vector<8x1xf32>
    %23 = vector.broadcast %12 : vector<8x1xf32> to vector<8x32xf32>
    %24 = arith.subf %4, %23 : vector<8x32xf32>
    %25 = vector.broadcast %22 : vector<8x1xf32> to vector<8x32xf32>
    %26 = arith.mulf %24, %25 : vector<8x32xf32>
    %27 = vector.shape_cast %6 : vector<32xf32> to vector<1x32xf32>
    %28 = vector.broadcast %27 : vector<1x32xf32> to vector<8x32xf32>
    %29 = arith.mulf %26, %28 : vector<8x32xf32>
    %30 = vector.shape_cast %8 : vector<32xf32> to vector<1x32xf32>
    %31 = vector.broadcast %30 : vector<1x32xf32> to vector<8x32xf32>
    %32 = arith.addf %29, %31 : vector<8x32xf32>
    %c0_11 = arith.constant 0 : index
    %c0_12 = arith.constant 0 : index
    %33 = vector.load %arg8[%c0_11, %c0_12] : memref<32x32xf32, #tpu.memory_space<vmem>>, vector<32x32xf32>
    %cst_13 = arith.constant dense<0.000000e+00> : vector<8x32xf32>
    %34 = tpu.matmul %32, %33, %cst_13 {dimension_numbers = #tpu.dot_dimension_numbers<[1], [0], [0], [1], [0, 0, 1, 1], [], []>} : vector<8x32xf32>, vector<32x32xf32>, vector<8x32xf32> -> vector<8x32xf32>
    %cst_14 = arith.constant 0.176776692 : f32
    %35 = vector.broadcast %cst_14 : f32 to vector<8x32xf32>
    %36 = arith.mulf %34, %35 : vector<8x32xf32>
    %c8_i32 = arith.constant 8 : i32
    %37 = arith.muli %arg1, %c8_i32 : i32
    %38 = tpu.iota {dimensions = array<i32: 0>} : vector<8x8xi32>
    %39 = vector.broadcast %37 : i32 to vector<8x8xi32>
    %40 = arith.addi %39, %38 : vector<8x8xi32>
    %41 = tpu.iota {dimensions = array<i32: 1>} : vector<8x8xi32>
    %42 = arith.cmpi sge, %40, %41 : vector<8x8xi32>
    %43 = vector.extract_strided_slice %36 {offsets = [0, 0], sizes = [8, 8], strides = [1, 1]} : vector<8x32xf32> to vector<8x8xf32>
    %c0_15 = arith.constant 0 : index
    %c0_16 = arith.constant 0 : index
    %44 = vector.load %arg15[%c0_15, %c0_16] : memref<8x64xf32, #tpu.memory_space<vmem>>, vector<8x8xf32>
    %c0_17 = arith.constant 0 : index
    %c32 = arith.constant 32 : index
    %45 = vector.load %arg15[%c0_17, %c32] : memref<8x64xf32, #tpu.memory_space<vmem>>, vector<8x8xf32>
    %cst_18 = arith.constant dense<0.000000e+00> : vector<8x8xf32>
    %46 = tpu.matmul %43, %44, %cst_18 {dimension_numbers = #tpu.dot_dimension_numbers<[1], [1], [0], [0], [0, 0, 1, 0], [], []>} : vector<8x8xf32>, vector<8x8xf32>, vector<8x8xf32> -> vector<8x8xf32>
    %cst_19 = arith.constant 0xFF800000 : f32
    %47 = vector.broadcast %cst_19 : f32 to vector<8x8xf32>
    %48 = arith.select %42, %46, %47 : vector<8x8xi1>, vector<8x8xf32>
    %cst_20 = arith.constant dense<0xFF800000> : vector<8xf32>
    %49 = vector.multi_reduction <maximumf>, %48, %cst_20 [1] : vector<8x8xf32> to vector<8xf32>
    %50 = vector.shape_cast %49 : vector<8xf32> to vector<8x1xf32>
    %51 = vector.broadcast %50 : vector<8x1xf32> to vector<8x8xf32>
    %52 = arith.subf %48, %51 : vector<8x8xf32>
    %53 = math.exp %52 : vector<8x8xf32>
    %cst_21 = arith.constant dense<0.000000e+00> : vector<8xf32>
    %54 = vector.multi_reduction <add>, %53, %cst_21 [1] : vector<8x8xf32> to vector<8xf32>
    %55 = vector.shape_cast %54 : vector<8xf32> to vector<8x1xf32>
    %56 = tpu.reciprocal %55 {approx = true} : vector<8x1xf32> -> vector<8x1xf32>
    %57 = vector.broadcast %56 : vector<8x1xf32> to vector<8x8xf32>
    %58 = arith.mulf %53, %57 : vector<8x8xf32>
    %cst_22 = arith.constant dense<0.000000e+00> : vector<8x8xf32>
    %59 = tpu.matmul %58, %45, %cst_22 {dimension_numbers = #tpu.dot_dimension_numbers<[1], [0], [0], [1], [0, 0, 1, 1], [], []>} : vector<8x8xf32>, vector<8x8xf32>, vector<8x8xf32> -> vector<8x8xf32>
    %c0_23 = arith.constant 0 : index
    %c0_24 = arith.constant 0 : index
    %60 = vector.load %arg16[%c0_23, %c0_24] : memref<8x32xf32, #tpu.memory_space<vmem>>, vector<8x8xf32>
    tpu.vector_store %arg16[%c0_23, %c0_24], %59 {strides = array<i32>} : memref<8x32xf32, #tpu.memory_space<vmem>>, vector<8x8xf32>,
    %61 = vector.extract_strided_slice %36 {offsets = [0, 8], sizes = [8, 8], strides = [1, 1]} : vector<8x32xf32> to vector<8x8xf32>
    %c0_25 = arith.constant 0 : index
    %c8 = arith.constant 8 : index
    %62 = vector.load %arg15[%c0_25, %c8] : memref<8x64xf32, #tpu.memory_space<vmem>>, vector<8x8xf32>
    %c0_26 = arith.constant 0 : index
    %c40 = arith.constant 40 : index
    %63 = vector.load %arg15[%c0_26, %c40] : memref<8x64xf32, #tpu.memory_space<vmem>>, vector<8x8xf32>
    %cst_27 = arith.constant dense<0.000000e+00> : vector<8x8xf32>
    %64 = tpu.matmul %61, %62, %cst_27 {dimension_numbers = #tpu.dot_dimension_numbers<[1], [1], [0], [0], [0, 0, 1, 0], [], []>} : vector<8x8xf32>, vector<8x8xf32>, vector<8x8xf32> -> vector<8x8xf32>
    %cst_28 = arith.constant 0xFF800000 : f32
    %65 = vector.broadcast %cst_28 : f32 to vector<8x8xf32>
    %66 = arith.select %42, %64, %65 : vector<8x8xi1>, vector<8x8xf32>
    %cst_29 = arith.constant dense<0xFF800000> : vector<8xf32>
    %67 = vector.multi_reduction <maximumf>, %66, %cst_29 [1] : vector<8x8xf32> to vector<8xf32>
    %68 = vector.shape_cast %67 : vector<8xf32> to vector<8x1xf32>
    %69 = vector.broadcast %68 : vector<8x1xf32> to vector<8x8xf32>
    %70 = arith.subf %66, %69 : vector<8x8xf32>
    %71 = math.exp %70 : vector<8x8xf32>
    %cst_30 = arith.constant dense<0.000000e+00> : vector<8xf32>
    %72 = vector.multi_reduction <add>, %71, %cst_30 [1] : vector<8x8xf32> to vector<8xf32>
    %73 = vector.shape_cast %72 : vector<8xf32> to vector<8x1xf32>
    %74 = tpu.reciprocal %73 {approx = true} : vector<8x1xf32> -> vector<8x1xf32>
    %75 = vector.broadcast %74 : vector<8x1xf32> to vector<8x8xf32>
    %76 = arith.mulf %71, %75 : vector<8x8xf32>
    %cst_31 = arith.constant dense<0.000000e+00> : vector<8x8xf32>
    %77 = tpu.matmul %76, %63, %cst_31 {dimension_numbers = #tpu.dot_dimension_numbers<[1], [0], [0], [1], [0, 0, 1, 1], [], []>} : vector<8x8xf32>, vector<8x8xf32>, vector<8x8xf32> -> vector<8x8xf32>
    %c0_32 = arith.constant 0 : index
    %c8_33 = arith.constant 8 : index
    %78 = vector.load %arg16[%c0_32, %c8_33] : memref<8x32xf32, #tpu.memory_space<vmem>>, vector<8x8xf32>
    tpu.vector_store %arg16[%c0_32, %c8_33], %77 {strides = array<i32>} : memref<8x32xf32, #tpu.memory_space<vmem>>, vector<8x8xf32>,
    %79 = vector.extract_strided_slice %36 {offsets = [0, 16], sizes = [8, 8], strides = [1, 1]} : vector<8x32xf32> to vector<8x8xf32>
    %c0_34 = arith.constant 0 : index
    %c16 = arith.constant 16 : index
    %80 = vector.load %arg15[%c0_34, %c16] : memref<8x64xf32, #tpu.memory_space<vmem>>, vector<8x8xf32>
    %c0_35 = arith.constant 0 : index
    %c48 = arith.constant 48 : index
    %81 = vector.load %arg15[%c0_35, %c48] : memref<8x64xf32, #tpu.memory_space<vmem>>, vector<8x8xf32>
    %cst_36 = arith.constant dense<0.000000e+00> : vector<8x8xf32>
    %82 = tpu.matmul %79, %80, %cst_36 {dimension_numbers = #tpu.dot_dimension_numbers<[1], [1], [0], [0], [0, 0, 1, 0], [], []>} : vector<8x8xf32>, vector<8x8xf32>, vector<8x8xf32> -> vector<8x8xf32>
    %cst_37 = arith.constant 0xFF800000 : f32
    %83 = vector.broadcast %cst_37 : f32 to vector<8x8xf32>
    %84 = arith.select %42, %82, %83 : vector<8x8xi1>, vector<8x8xf32>
    %cst_38 = arith.constant dense<0xFF800000> : vector<8xf32>
    %85 = vector.multi_reduction <maximumf>, %84, %cst_38 [1] : vector<8x8xf32> to vector<8xf32>
    %86 = vector.shape_cast %85 : vector<8xf32> to vector<8x1xf32>
    %87 = vector.broadcast %86 : vector<8x1xf32> to vector<8x8xf32>
    %88 = arith.subf %84, %87 : vector<8x8xf32>
    %89 = math.exp %88 : vector<8x8xf32>
    %cst_39 = arith.constant dense<0.000000e+00> : vector<8xf32>
    %90 = vector.multi_reduction <add>, %89, %cst_39 [1] : vector<8x8xf32> to vector<8xf32>
    %91 = vector.shape_cast %90 : vector<8xf32> to vector<8x1xf32>
    %92 = tpu.reciprocal %91 {approx = true} : vector<8x1xf32> -> vector<8x1xf32>
    %93 = vector.broadcast %92 : vector<8x1xf32> to vector<8x8xf32>
    %94 = arith.mulf %89, %93 : vector<8x8xf32>
    %cst_40 = arith.constant dense<0.000000e+00> : vector<8x8xf32>
    %95 = tpu.matmul %94, %81, %cst_40 {dimension_numbers = #tpu.dot_dimension_numbers<[1], [0], [0], [1], [0, 0, 1, 1], [], []>} : vector<8x8xf32>, vector<8x8xf32>, vector<8x8xf32> -> vector<8x8xf32>
    %c0_41 = arith.constant 0 : index
    %c16_42 = arith.constant 16 : index
    %96 = vector.load %arg16[%c0_41, %c16_42] : memref<8x32xf32, #tpu.memory_space<vmem>>, vector<8x8xf32>
    tpu.vector_store %arg16[%c0_41, %c16_42], %95 {strides = array<i32>} : memref<8x32xf32, #tpu.memory_space<vmem>>, vector<8x8xf32>,
    %97 = vector.extract_strided_slice %36 {offsets = [0, 24], sizes = [8, 8], strides = [1, 1]} : vector<8x32xf32> to vector<8x8xf32>
    %c0_43 = arith.constant 0 : index
    %c24 = arith.constant 24 : index
    %98 = vector.load %arg15[%c0_43, %c24] : memref<8x64xf32, #tpu.memory_space<vmem>>, vector<8x8xf32>
    %c0_44 = arith.constant 0 : index
    %c56 = arith.constant 56 : index
    %99 = vector.load %arg15[%c0_44, %c56] : memref<8x64xf32, #tpu.memory_space<vmem>>, vector<8x8xf32>
    %cst_45 = arith.constant dense<0.000000e+00> : vector<8x8xf32>
    %100 = tpu.matmul %97, %98, %cst_45 {dimension_numbers = #tpu.dot_dimension_numbers<[1], [1], [0], [0], [0, 0, 1, 0], [], []>} : vector<8x8xf32>, vector<8x8xf32>, vector<8x8xf32> -> vector<8x8xf32>
    %cst_46 = arith.constant 0xFF800000 : f32
    %101 = vector.broadcast %cst_46 : f32 to vector<8x8xf32>
    %102 = arith.select %42, %100, %101 : vector<8x8xi1>, vector<8x8xf32>
    %cst_47 = arith.constant dense<0xFF800000> : vector<8xf32>
    %103 = vector.multi_reduction <maximumf>, %102, %cst_47 [1] : vector<8x8xf32> to vector<8xf32>
    %104 = vector.shape_cast %103 : vector<8xf32> to vector<8x1xf32>
    %105 = vector.broadcast %104 : vector<8x1xf32> to vector<8x8xf32>
    %106 = arith.subf %102, %105 : vector<8x8xf32>
    %107 = math.exp %106 : vector<8x8xf32>
    %cst_48 = arith.constant dense<0.000000e+00> : vector<8xf32>
    %108 = vector.multi_reduction <add>, %107, %cst_48 [1] : vector<8x8xf32> to vector<8xf32>
    %109 = vector.shape_cast %108 : vector<8xf32> to vector<8x1xf32>
    %110 = tpu.reciprocal %109 {approx = true} : vector<8x1xf32> -> vector<8x1xf32>
    %111 = vector.broadcast %110 : vector<8x1xf32> to vector<8x8xf32>
    %112 = arith.mulf %107, %111 : vector<8x8xf32>
    %cst_49 = arith.constant dense<0.000000e+00> : vector<8x8xf32>
    %113 = tpu.matmul %112, %99, %cst_49 {dimension_numbers = #tpu.dot_dimension_numbers<[1], [0], [0], [1], [0, 0, 1, 1], [], []>} : vector<8x8xf32>, vector<8x8xf32>, vector<8x8xf32> -> vector<8x8xf32>
    %c0_50 = arith.constant 0 : index
    %c24_51 = arith.constant 24 : index
    %114 = vector.load %arg16[%c0_50, %c24_51] : memref<8x32xf32, #tpu.memory_space<vmem>>, vector<8x8xf32>
    tpu.vector_store %arg16[%c0_50, %c24_51], %113 {strides = array<i32>} : memref<8x32xf32, #tpu.memory_space<vmem>>, vector<8x8xf32>,
    %c0_52 = arith.constant 0 : index
    %c0_53 = arith.constant 0 : index
    %115 = vector.load %arg16[%c0_52, %c0_53] : memref<8x32xf32, #tpu.memory_space<vmem>>, vector<8x32xf32>
    %116 = arith.addf %4, %115 : vector<8x32xf32>
    %c0_54 = arith.constant 0 : index
    %c0_55 = arith.constant 0 : index
    %117 = vector.load %arg6[%c0_54, %c0_55] : memref<1x32xf32, #tpu.memory_space<vmem>>, vector<1x32xf32>
    %118 = vector.shape_cast %117 : vector<1x32xf32> to vector<32xf32>
    %c0_56 = arith.constant 0 : index
    %c0_57 = arith.constant 0 : index
    %119 = vector.load %arg7[%c0_56, %c0_57] : memref<1x32xf32, #tpu.memory_space<vmem>>, vector<1x32xf32>
    %120 = vector.shape_cast %119 : vector<1x32xf32> to vector<32xf32>
    %cst_58 = arith.constant dense<0.000000e+00> : vector<8xf32>
    %121 = vector.multi_reduction <add>, %116, %cst_58 [1] : vector<8x32xf32> to vector<8xf32>
    %122 = vector.shape_cast %121 : vector<8xf32> to vector<8x1xf32>
    %cst_59 = arith.constant 3.200000e+01 : f32
    %123 = vector.broadcast %cst_59 : f32 to vector<8x1xf32>
    %124 = arith.divf %122, %123 : vector<8x1xf32>
    %125 = vector.broadcast %124 : vector<8x1xf32> to vector<8x32xf32>
    %126 = arith.subf %116, %125 : vector<8x32xf32>
    %127 = arith.mulf %126, %126 : vector<8x32xf32>
    %cst_60 = arith.constant dense<0.000000e+00> : vector<8xf32>
    %128 = vector.multi_reduction <add>, %127, %cst_60 [1] : vector<8x32xf32> to vector<8xf32>
    %129 = vector.shape_cast %128 : vector<8xf32> to vector<8x1xf32>
    %cst_61 = arith.constant 3.200000e+01 : f32
    %130 = vector.broadcast %cst_61 : f32 to vector<8x1xf32>
    %131 = arith.divf %129, %130 : vector<8x1xf32>
    %cst_62 = arith.constant 9.99999974E-6 : f32
    %132 = vector.broadcast %cst_62 : f32 to vector<8x1xf32>
    %133 = arith.addf %131, %132 : vector<8x1xf32>
    %134 = math.rsqrt %133 : vector<8x1xf32>
    %135 = vector.broadcast %124 : vector<8x1xf32> to vector<8x32xf32>
    %136 = arith.subf %116, %135 : vector<8x32xf32>
    %137 = vector.broadcast %134 : vector<8x1xf32> to vector<8x32xf32>
    %138 = arith.mulf %136, %137 : vector<8x32xf32>
    %139 = vector.shape_cast %118 : vector<32xf32> to vector<1x32xf32>
    %140 = vector.broadcast %139 : vector<1x32xf32> to vector<8x32xf32>
    %141 = arith.mulf %138, %140 : vector<8x32xf32>
    %142 = vector.shape_cast %120 : vector<32xf32> to vector<1x32xf32>
    %143 = vector.broadcast %142 : vector<1x32xf32> to vector<8x32xf32>
    %144 = arith.addf %141, %143 : vector<8x32xf32>
    %c0_63 = arith.constant 0 : index
    %c0_64 = arith.constant 0 : index
    %145 = vector.load %arg10[%c0_63, %c0_64] : memref<32x128xf32, #tpu.memory_space<vmem>>, vector<32x128xf32>
    %cst_65 = arith.constant dense<0.000000e+00> : vector<8x128xf32>
    %146 = tpu.matmul %144, %145, %cst_65 {dimension_numbers = #tpu.dot_dimension_numbers<[1], [0], [0], [1], [0, 0, 1, 1], [], []>} : vector<8x32xf32>, vector<32x128xf32>, vector<8x128xf32> -> vector<8x128xf32>
    %c0_66 = arith.constant 0 : index
    %c0_67 = arith.constant 0 : index
    %147 = vector.load %arg11[%c0_66, %c0_67] : memref<1x128xf32, #tpu.memory_space<vmem>>, vector<1x128xf32>
    %148 = vector.shape_cast %147 : vector<1x128xf32> to vector<128xf32>
    %149 = vector.shape_cast %148 : vector<128xf32> to vector<1x128xf32>
    %150 = vector.broadcast %149 : vector<1x128xf32> to vector<8x128xf32>
    %151 = arith.addf %146, %150 : vector<8x128xf32>
    %cst_68 = arith.constant 0.000000e+00 : f32
    %152 = vector.broadcast %cst_68 : f32 to vector<8x128xf32>
    %153 = arith.maximumf %151, %152 : vector<8x128xf32>
    %c0_69 = arith.constant 0 : index
    %c0_70 = arith.constant 0 : index
    %154 = vector.load %arg12[%c0_69, %c0_70] : memref<128x32xf32, #tpu.memory_space<vmem>>, vector<128x32xf32>
    %cst_71 = arith.constant dense<0.000000e+00> : vector<8x32xf32>
    %155 = tpu.matmul %153, %154, %cst_71 {dimension_numbers = #tpu.dot_dimension_numbers<[1], [0], [0], [1], [0, 0, 1, 1], [], []>} : vector<8x128xf32>, vector<128x32xf32>, vector<8x32xf32> -> vector<8x32xf32>
    %c0_72 = arith.constant 0 : index
    %c0_73 = arith.constant 0 : index
    %156 = vector.load %arg13[%c0_72, %c0_73] : memref<1x32xf32, #tpu.memory_space<vmem>>, vector<1x32xf32>
    %157 = vector.shape_cast %156 : vector<1x32xf32> to vector<32xf32>
    %158 = vector.shape_cast %157 : vector<32xf32> to vector<1x32xf32>
    %159 = vector.broadcast %158 : vector<1x32xf32> to vector<8x32xf32>
    %160 = arith.addf %155, %159 : vector<8x32xf32>
    %161 = arith.addf %116, %160 : vector<8x32xf32>
    %c0_74 = arith.constant 0 : index
    %c0_75 = arith.constant 0 : index
    %c0_76 = arith.constant 0 : index
    %162 = vector.load %arg14[%c0_74, %c0_75, %c0_76] : memref<1x8x32xf32, #tpu.memory_space<vmem>>, vector<1x8x32xf32>
    %163 = vector.shape_cast %162 : vector<1x8x32xf32> to vector<8x32xf32>
    %164 = vector.shape_cast %161 : vector<8x32xf32> to vector<1x8x32xf32>
    tpu.vector_store %arg14[%c0_74, %c0_75, %c0_76], %164 {strides = array<i32>} : memref<1x8x32xf32, #tpu.memory_space<vmem>>, vector<1x8x32xf32>,
    return
  }
  func.func @transform_0(%arg0: i32, %arg1: i32) -> (i32, i32, i32) {
    %c0_i32 = arith.constant 0 : i32
    %c0_i32_0 = arith.constant 0 : i32
    return %arg0, %arg1, %c0_i32 : i32, i32, i32
  }
  func.func @transform_1(%arg0: i32, %arg1: i32) -> (i32, i32, i32) {
    %c0_i32 = arith.constant 0 : i32
    %c0_i32_0 = arith.constant 0 : i32
    %c0_i32_1 = arith.constant 0 : i32
    return %arg0, %c0_i32, %c0_i32_0 : i32, i32, i32
  }
  func.func @transform_2(%arg0: i32, %arg1: i32) -> (i32, i32) {
    %c0_i32 = arith.constant 0 : i32
    %c0_i32_0 = arith.constant 0 : i32
    %c0_i32_1 = arith.constant 0 : i32
    return %c0_i32, %c0_i32_0 : i32, i32
  }
  func.func @transform_3(%arg0: i32, %arg1: i32) -> (i32, i32) {
    %c0_i32 = arith.constant 0 : i32
    %c0_i32_0 = arith.constant 0 : i32
    %c0_i32_1 = arith.constant 0 : i32
    return %c0_i32, %c0_i32_0 : i32, i32
  }
  func.func @transform_4(%arg0: i32, %arg1: i32) -> (i32, i32) {
    %c0_i32 = arith.constant 0 : i32
    %c0_i32_0 = arith.constant 0 : i32
    %c0_i32_1 = arith.constant 0 : i32
    return %c0_i32, %c0_i32_0 : i32, i32
  }
  func.func @transform_5(%arg0: i32, %arg1: i32) -> (i32, i32) {
    %c0_i32 = arith.constant 0 : i32
    %c0_i32_0 = arith.constant 0 : i32
    %c0_i32_1 = arith.constant 0 : i32
    return %c0_i32, %c0_i32_0 : i32, i32
  }
  func.func @transform_6(%arg0: i32, %arg1: i32) -> (i32, i32) {
    %c0_i32 = arith.constant 0 : i32
    %c0_i32_0 = arith.constant 0 : i32
    %c0_i32_1 = arith.constant 0 : i32
    return %c0_i32, %c0_i32_0 : i32, i32
  }
  func.func @transform_7(%arg0: i32, %arg1: i32) -> (i32, i32) {
    %c0_i32 = arith.constant 0 : i32
    %c0_i32_0 = arith.constant 0 : i32
    %c0_i32_1 = arith.constant 0 : i32
    return %c0_i32, %c0_i32_0 : i32, i32
  }
  func.func @transform_8(%arg0: i32, %arg1: i32) -> (i32, i32) {
    %c0_i32 = arith.constant 0 : i32
    %c0_i32_0 = arith.constant 0 : i32
    %c0_i32_1 = arith.constant 0 : i32
    return %c0_i32, %c0_i32_0 : i32, i32
  }
  func.func @transform_9(%arg0: i32, %arg1: i32) -> (i32, i32) {
    %c0_i32 = arith.constant 0 : i32
    %c0_i32_0 = arith.constant 0 : i32
    %c0_i32_1 = arith.constant 0 : i32
    return %c0_i32, %c0_i32_0 : i32, i32
  }
  func.func @transform_10(%arg0: i32, %arg1: i32) -> (i32, i32) {
    %c0_i32 = arith.constant 0 : i32
    %c0_i32_0 = arith.constant 0 : i32
    %c0_i32_1 = arith.constant 0 : i32
    return %c0_i32, %c0_i32_0 : i32, i32
  }
  func.func @transform_11(%arg0: i32, %arg1: i32) -> (i32, i32) {
    %c0_i32 = arith.constant 0 : i32
    %c0_i32_0 = arith.constant 0 : i32
    %c0_i32_1 = arith.constant 0 : i32
    return %c0_i32, %c0_i32_0 : i32, i32
  }
  func.func @transform_12(%arg0: i32, %arg1: i32) -> (i32, i32, i32) {
    %c0_i32 = arith.constant 0 : i32
    %c0_i32_0 = arith.constant 0 : i32
    return %arg0, %arg1, %c0_i32 : i32, i32, i32
  }
}

</mosaic_0001>

<llo_original>
// kernel: tpu_custom_call.1
$region0: #{tpu_custom_call.1}
  #allocation0 [shape = 'u32[]', space=smem, size = 0x4, offset = 0x4, fixed_abs, tag = 'smem constant byte address 0x4 - core index']
  #allocation1 [shape = 'u32[144,128]{1,0:T(1,128)}', space=vmem, size = 0x12000, scoped, tag = 'internal scratch']
  #allocation2 [shape = 'f32[8,64]{1,0:T(8,128)}', space=vmem, size = 0x1000, scoped, tag = 'scratch operand']
  #allocation3 [shape = 'f32[8,32]{1,0:T(8,128)}', space=vmem, size = 0x1000, scoped, tag = 'scratch operand']
  %s0 = inlined_call_operand.vmem [shape: f32[2,8,32], index: 0, kind: input, shape index: {}]
  %s1 = inlined_call_operand.vmem [shape: f32[2,8,32], index: 1, kind: input, shape index: {}]
  %s2 = inlined_call_operand.vmem [shape: f32[1,32], index: 2, kind: input, shape index: {}]
  %s3 = inlined_call_operand.vmem [shape: f32[1,32], index: 3, kind: input, shape index: {}]
  %s4 = inlined_call_operand.vmem [shape: f32[1,32], index: 4, kind: input, shape index: {}]
  %s5 = inlined_call_operand.vmem [shape: f32[1,32], index: 5, kind: input, shape index: {}]
  %s6 = inlined_call_operand.vmem [shape: f32[32,32], index: 6, kind: input, shape index: {}]
  %s7 = inlined_call_operand.vmem [shape: f32[32,64], index: 7, kind: input, shape index: {}]
  %s8 = inlined_call_operand.vmem [shape: f32[32,128], index: 8, kind: input, shape index: {}]
  %s9 = inlined_call_operand.vmem [shape: f32[1,128], index: 9, kind: input, shape index: {}]
  %s10 = inlined_call_operand.vmem [shape: f32[128,32], index: 10, kind: input, shape index: {}]
  %s11 = inlined_call_operand.vmem [shape: f32[1,32], index: 11, kind: input, shape index: {}]
  %s12 = inlined_call_operand.hbm [shape: f32[2,8,32], index: 12, kind: output, shape index: {}]
  %s13 = sld [smem:[#allocation0]]
  $region85: #{tpu_custom_call.1} parent=0
    _
  %s15 = ssub.s32 1, %s13
  %s16 = scalar_select 0, %s15, %s13
  $region1: #{tpu_custom_call.1} parent=0
    #allocation4 [shape = 'u8[8192]{0}', space=vmem, size = 0x2000, scoped, tag = 'output window, operand 0']
    #allocation5 [shape = 's32[2]{0}', space=sflag, size = 0x8, scoped, tag = 'scoped memory for tpu_custom_call.1']
    %17 = vsyncpa [#allocation5], 0
    %s18 = scalar_lea.sflag [#allocation5], 1
    %19 = vsyncpa %s18, 0
    loop: start=0, step=1, limit=4
    $region2: #{tpu_custom_call.1} parent=1 // loop_pre_header
      _
    $region3: #{tpu_custom_call.1} parent=1 // loop_header
      %s21 = sphi 0, %s25
      %p22 = scmp.ge.s32.totalorder %s21, 4
      %s28 = sphi 0, %s40
      %s29 = sphi 0, %s36
      %s30 = sphi 0, %s28
      %s31 = sphi 0, %s29
      %s32 = sphi 0, %s30
      %s33 = sphi 0, %s31
      %s45 = sphi 0, %s47
      %s48 = sphi 0, %s45
      %s49 = sphi 0, %s48
      %s65 = sphi 0, %s49
      %s71 = sphi 0, %s73
      %s74 = sphi 0, %s71
      %s75 = sphi 0, %s74
      %s91 = sphi 0, %s75
      %s95 = sphi 0, %s95
      %s97 = sphi 0, %s95
      %s98 = sphi 0, %s97
      %s112 = sphi 0, %s98
      %s116 = sphi 0, %s116
      %s118 = sphi 0, %s116
      %s119 = sphi 0, %s118
      %s133 = sphi 0, %s119
      %s137 = sphi 0, %s137
      %s139 = sphi 0, %s137
      %s140 = sphi 0, %s139
      %s154 = sphi 0, %s140
      %s158 = sphi 0, %s158
      %s160 = sphi 0, %s158
      %s161 = sphi 0, %s160
      %s175 = sphi 0, %s161
      %s179 = sphi 0, %s179
      %s181 = sphi 0, %s179
      %s182 = sphi 0, %s181
      %s196 = sphi 0, %s182
      %s200 = sphi 0, %s200
      %s202 = sphi 0, %s200
      %s203 = sphi 0, %s202
      %s217 = sphi 0, %s203
      %s221 = sphi 0, %s221
      %s223 = sphi 0, %s221
      %s224 = sphi 0, %s223
      %s238 = sphi 0, %s224
      %s242 = sphi 0, %s242
      %s244 = sphi 0, %s242
      %s245 = sphi 0, %s244
      %s259 = sphi 0, %s245
      %s263 = sphi 0, %s263
      %s265 = sphi 0, %s263
      %s266 = sphi 0, %s265
      %s280 = sphi 0, %s266
      %s284 = sphi 0, %s284
      %s286 = sphi 0, %s284
      %s287 = sphi 0, %s286
      %s301 = sphi 0, %s287
      %s309 = sphi 0, %s311
      %s312 = sphi 0, %s309
      %s313 = sphi 0, %s312
      %s329 = sphi 0, %s313
    $region4: #{tpu_custom_call.1} parent=1 // loop_header_branch
      %24 = sbr.rel (%p22) target = $region8
    $region5: #{tpu_custom_call.1} parent=1 // loop_body
      %s26 = ssub.s32 %s21, 1
      %s27 = ssub.s32 %s21, 2
      %s34 = sadd.s32 1, %s29
      %p35 = scmp.ge.s32.totalorder %s34, 1
      %s36 = scalar_select %p35, 0, %s34
      %s37 = sadd.s32 1, %s28
      %s38 = scalar_select %p35, %s37, %s28
      %p39 = scmp.ge.s32.totalorder %s38, 2
      %s40 = scalar_select %p39, 0, %s38
      %s41 = ssub.s32 %s28, %s40
      %s42 = ssub.s32 %s29, %s36
      %s43 = sor.u32 %s41, %s42
      %p44 = scmp.eq.s32.totalorder %s43, 0
      %s46 = sadd.s32 %s45, 1
      %s47 = scalar_select %p44, %s45, %s46
      %p50 = pneg %p44
      %p51 = scmp.eq.s32.totalorder %s21, 1
      %p52 = por %p50, %p51
      %p53 = scmp.ne.s32.totalorder %s45, %s48
      %p54 = scmp.eq.s32.totalorder %s21, 0
      %p55 = por %p53, %p54
      %p56 = scmp.ne.s32.totalorder %s45, %s48
      %p57 = scmp.eq.s32.totalorder %s26, 1
      %p58 = por %p56, %p57
      %p59 = scmp.ne.s32.totalorder %s48, %s49
      %p60 = scmp.eq.s32.totalorder %s26, 0
      %p61 = por %p59, %p60
      %p62 = scmp.ne.s32.totalorder %s48, %s49
      %p63 = scmp.eq.s32.totalorder %s27, 1
      %p64 = por %p62, %p63
      %p66 = scmp.ne.s32.totalorder %s49, %s65
      %p67 = scmp.eq.s32.totalorder %s27, 0
      %p68 = por %p66, %p67
      %s69 = ssub.s32 %s28, %s40
      %p70 = scmp.eq.s32.totalorder %s69, 0
      %s72 = sadd.s32 %s71, 1
      %s73 = scalar_select %p70, %s71, %s72
      %p76 = pneg %p70
      %p77 = scmp.eq.s32.totalorder %s21, 1
      %p78 = por %p76, %p77
      %p79 = scmp.ne.s32.totalorder %s71, %s74
      %p80 = scmp.eq.s32.totalorder %s21, 0
      %p81 = por %p79, %p80
      %p82 = scmp.ne.s32.totalorder %s71, %s74
      %p83 = scmp.eq.s32.totalorder %s26, 1
      %p84 = por %p82, %p83
      %p85 = scmp.ne.s32.totalorder %s74, %s75
      %p86 = scmp.eq.s32.totalorder %s26, 0
      %p87 = por %p85, %p86
      %p88 = scmp.ne.s32.totalorder %s74, %s75
      %p89 = scmp.eq.s32.totalorder %s27, 1
      %p90 = por %p88, %p89
      %p92 = scmp.ne.s32.totalorder %s75, %s91
      %p93 = scmp.eq.s32.totalorder %s27, 0
      %p94 = por %p92, %p93
      %s96 = sadd.s32 %s95, 1
      %p99 = scmp.eq.s32.totalorder %s21, 1
      %p100 = scmp.ne.s32.totalorder %s95, %s97
      %p101 = scmp.eq.s32.totalorder %s21, 0
      %p102 = por %p100, %p101
      %p103 = scmp.ne.s32.totalorder %s95, %s97
      %p104 = scmp.eq.s32.totalorder %s26, 1
      %p105 = por %p103, %p104
      %p106 = scmp.ne.s32.totalorder %s97, %s98
      %p107 = scmp.eq.s32.totalorder %s26, 0
      %p108 = por %p106, %p107
      %p109 = scmp.ne.s32.totalorder %s97, %s98
      %p110 = scmp.eq.s32.totalorder %s27, 1
      %p111 = por %p109, %p110
      %p113 = scmp.ne.s32.totalorder %s98, %s112
      %p114 = scmp.eq.s32.totalorder %s27, 0
      %p115 = por %p113, %p114
      %s117 = sadd.s32 %s116, 1
      %p120 = scmp.eq.s32.totalorder %s21, 1
      %p121 = scmp.ne.s32.totalorder %s116, %s118
      %p122 = scmp.eq.s32.totalorder %s21, 0
      %p123 = por %p121, %p122
      %p124 = scmp.ne.s32.totalorder %s116, %s118
      %p125 = scmp.eq.s32.totalorder %s26, 1
      %p126 = por %p124, %p125
      %p127 = scmp.ne.s32.totalorder %s118, %s119
      %p128 = scmp.eq.s32.totalorder %s26, 0
      %p129 = por %p127, %p128
      %p130 = scmp.ne.s32.totalorder %s118, %s119
      %p131 = scmp.eq.s32.totalorder %s27, 1
      %p132 = por %p130, %p131
      %p134 = scmp.ne.s32.totalorder %s119, %s133
      %p135 = scmp.eq.s32.totalorder %s27, 0
      %p136 = por %p134, %p135
      %s138 = sadd.s32 %s137, 1
      %p141 = scmp.eq.s32.totalorder %s21, 1
      %p142 = scmp.ne.s32.totalorder %s137, %s139
      %p143 = scmp.eq.s32.totalorder %s21, 0
      %p144 = por %p142, %p143
      %p145 = scmp.ne.s32.totalorder %s137, %s139
      %p146 = scmp.eq.s32.totalorder %s26, 1
      %p147 = por %p145, %p146
      %p148 = scmp.ne.s32.totalorder %s139, %s140
      %p149 = scmp.eq.s32.totalorder %s26, 0
      %p150 = por %p148, %p149
      %p151 = scmp.ne.s32.totalorder %s139, %s140
      %p152 = scmp.eq.s32.totalorder %s27, 1
      %p153 = por %p151, %p152
      %p155 = scmp.ne.s32.totalorder %s140, %s154
      %p156 = scmp.eq.s32.totalorder %s27, 0
      %p157 = por %p155, %p156
      %s159 = sadd.s32 %s158, 1
      %p162 = scmp.eq.s32.totalorder %s21, 1
      %p163 = scmp.ne.s32.totalorder %s158, %s160
      %p164 = scmp.eq.s32.totalorder %s21, 0
      %p165 = por %p163, %p164
      %p166 = scmp.ne.s32.totalorder %s158, %s160
      %p167 = scmp.eq.s32.totalorder %s26, 1
      %p168 = por %p166, %p167
      %p169 = scmp.ne.s32.totalorder %s160, %s161
      %p170 = scmp.eq.s32.totalorder %s26, 0
      %p171 = por %p169, %p170
      %p172 = scmp.ne.s32.totalorder %s160, %s161
      %p173 = scmp.eq.s32.totalorder %s27, 1
      %p174 = por %p172, %p173
      %p176 = scmp.ne.s32.totalorder %s161, %s175
      %p177 = scmp.eq.s32.totalorder %s27, 0
      %p178 = por %p176, %p177
      %s180 = sadd.s32 %s179, 1
      %p183 = scmp.eq.s32.totalorder %s21, 1
      %p184 = scmp.ne.s32.totalorder %s179, %s181
      %p185 = scmp.eq.s32.totalorder %s21, 0
      %p186 = por %p184, %p185
      %p187 = scmp.ne.s32.totalorder %s179, %s181
      %p188 = scmp.eq.s32.totalorder %s26, 1
      %p189 = por %p187, %p188
      %p190 = scmp.ne.s32.totalorder %s181, %s182
      %p191 = scmp.eq.s32.totalorder %s26, 0
      %p192 = por %p190, %p191
      %p193 = scmp.ne.s32.totalorder %s181, %s182
      %p194 = scmp.eq.s32.totalorder %s27, 1
      %p195 = por %p193, %p194
      %p197 = scmp.ne.s32.totalorder %s182, %s196
      %p198 = scmp.eq.s32.totalorder %s27, 0
      %p199 = por %p197, %p198
      %s201 = sadd.s32 %s200, 1
      %p204 = scmp.eq.s32.totalorder %s21, 1
      %p205 = scmp.ne.s32.totalorder %s200, %s202
      %p206 = scmp.eq.s32.totalorder %s21, 0
      %p207 = por %p205, %p206
      %p208 = scmp.ne.s32.totalorder %s200, %s202
      %p209 = scmp.eq.s32.totalorder %s26, 1
      %p210 = por %p208, %p209
      %p211 = scmp.ne.s32.totalorder %s202, %s203
      %p212 = scmp.eq.s32.totalorder %s26, 0
      %p213 = por %p211, %p212
      %p214 = scmp.ne.s32.totalorder %s202, %s203
      %p215 = scmp.eq.s32.totalorder %s27, 1
      %p216 = por %p214, %p215
      %p218 = scmp.ne.s32.totalorder %s203, %s217
      %p219 = scmp.eq.s32.totalorder %s27, 0
      %p220 = por %p218, %p219
      %s222 = sadd.s32 %s221, 1
      %p225 = scmp.eq.s32.totalorder %s21, 1
      %p226 = scmp.ne.s32.totalorder %s221, %s223
      %p227 = scmp.eq.s32.totalorder %s21, 0
      %p228 = por %p226, %p227
      %p229 = scmp.ne.s32.totalorder %s221, %s223
      %p230 = scmp.eq.s32.totalorder %s26, 1
      %p231 = por %p229, %p230
      %p232 = scmp.ne.s32.totalorder %s223, %s224
      %p233 = scmp.eq.s32.totalorder %s26, 0
      %p234 = por %p232, %p233
      %p235 = scmp.ne.s32.totalorder %s223, %s224
      %p236 = scmp.eq.s32.totalorder %s27, 1
      %p237 = por %p235, %p236
      %p239 = scmp.ne.s32.totalorder %s224, %s238
      %p240 = scmp.eq.s32.totalorder %s27, 0
      %p241 = por %p239, %p240
      %s243 = sadd.s32 %s242, 1
      %p246 = scmp.eq.s32.totalorder %s21, 1
      %p247 = scmp.ne.s32.totalorder %s242, %s244
      %p248 = scmp.eq.s32.totalorder %s21, 0
      %p249 = por %p247, %p248
      %p250 = scmp.ne.s32.totalorder %s242, %s244
      %p251 = scmp.eq.s32.totalorder %s26, 1
      %p252 = por %p250, %p251
      %p253 = scmp.ne.s32.totalorder %s244, %s245
      %p254 = scmp.eq.s32.totalorder %s26, 0
      %p255 = por %p253, %p254
      %p256 = scmp.ne.s32.totalorder %s244, %s245
      %p257 = scmp.eq.s32.totalorder %s27, 1
      %p258 = por %p256, %p257
      %p260 = scmp.ne.s32.totalorder %s245, %s259
      %p261 = scmp.eq.s32.totalorder %s27, 0
      %p262 = por %p260, %p261
      %s264 = sadd.s32 %s263, 1
      %p267 = scmp.eq.s32.totalorder %s21, 1
      %p268 = scmp.ne.s32.totalorder %s263, %s265
      %p269 = scmp.eq.s32.totalorder %s21, 0
      %p270 = por %p268, %p269
      %p271 = scmp.ne.s32.totalorder %s263, %s265
      %p272 = scmp.eq.s32.totalorder %s26, 1
      %p273 = por %p271, %p272
      %p274 = scmp.ne.s32.totalorder %s265, %s266
      %p275 = scmp.eq.s32.totalorder %s26, 0
      %p276 = por %p274, %p275
      %p277 = scmp.ne.s32.totalorder %s265, %s266
      %p278 = scmp.eq.s32.totalorder %s27, 1
      %p279 = por %p277, %p278
      %p281 = scmp.ne.s32.totalorder %s266, %s280
      %p282 = scmp.eq.s32.totalorder %s27, 0
      %p283 = por %p281, %p282
      %s285 = sadd.s32 %s284, 1
      %p288 = scmp.eq.s32.totalorder %s21, 1
      %p289 = scmp.ne.s32.totalorder %s284, %s286
      %p290 = scmp.eq.s32.totalorder %s21, 0
      %p291 = por %p289, %p290
      %p292 = scmp.ne.s32.totalorder %s284, %s286
      %p293 = scmp.eq.s32.totalorder %s26, 1
      %p294 = por %p292, %p293
      %p295 = scmp.ne.s32.totalorder %s286, %s287
      %p296 = scmp.eq.s32.totalorder %s26, 0
      %p297 = por %p295, %p296
      %p298 = scmp.ne.s32.totalorder %s286, %s287
      %p299 = scmp.eq.s32.totalorder %s27, 1
      %p300 = por %p298, %p299
      %p302 = scmp.ne.s32.totalorder %s287, %s301
      %p303 = scmp.eq.s32.totalorder %s27, 0
      %p304 = por %p302, %p303
      %s305 = ssub.s32 %s28, %s40
      %s306 = ssub.s32 %s29, %s36
      %s307 = sor.u32 %s305, %s306
      %p308 = scmp.eq.s32.totalorder %s307, 0
      %s310 = sadd.s32 %s309, 1
      %s311 = scalar_select %p308, %s309, %s310
      %p314 = pneg %p308
      %p315 = scmp.eq.s32.totalorder %s21, 1
      %p316 = por %p314, %p315
      %p317 = scmp.ne.s32.totalorder %s309, %s312
      %p318 = scmp.eq.s32.totalorder %s21, 0
      %p319 = por %p317, %p318
      %p320 = scmp.ne.s32.totalorder %s309, %s312
      %p321 = scmp.eq.s32.totalorder %s26, 1
      %p322 = por %p320, %p321
      %p323 = scmp.ne.s32.totalorder %s312, %s313
      %p324 = scmp.eq.s32.totalorder %s26, 0
      %p325 = por %p323, %p324
      %p326 = scmp.ne.s32.totalorder %s312, %s313
      %p327 = scmp.eq.s32.totalorder %s27, 1
      %p328 = por %p326, %p327
      %p330 = scmp.ne.s32.totalorder %s313, %s329
      %p331 = scmp.eq.s32.totalorder %s27, 0
      %p332 = por %p330, %p331
      %p333 = scmp.le.s32.totalorder 1, %s21
      %p334 = scmp.lt.s32.totalorder %s21, 3
      %p335 = pnand %p333, %p334
      %p336 = pneg %p335
      // Predicated region
      $region9: #{tpu_custom_call.1} parent=5 // pred_check
        _
      $region10: #{tpu_custom_call.1} parent=5 // pred_check_branch
        %338 = sbr.rel (%p335) target = $region12
      $region11: #{tpu_custom_call.1} parent=5 // pred_region
        %s339 = ssub.s32 %s21, 1
        // Predicated region
        $region13: #{tpu_custom_call.1} parent=11 // pred_check
          %p340 = pneg %p108
        $region14: #{tpu_custom_call.1} parent=11 // pred_check_branch
          %342 = sbr.rel (%p340) target = $region16
        $region15: #{tpu_custom_call.1} parent=11 // pred_region
          _
        $region16: #{tpu_custom_call.1} parent=11 // pred_fallthru
          _
        // Predicated region
        $region17: #{tpu_custom_call.1} parent=11 // pred_check
          %p343 = pneg %p129
        $region18: #{tpu_custom_call.1} parent=11 // pred_check_branch
          %345 = sbr.rel (%p343) target = $region20
        $region19: #{tpu_custom_call.1} parent=11 // pred_region
          _
        $region20: #{tpu_custom_call.1} parent=11 // pred_fallthru
          _
        // Predicated region
        $region21: #{tpu_custom_call.1} parent=11 // pred_check
          %p346 = pneg %p150
        $region22: #{tpu_custom_call.1} parent=11 // pred_check_branch
          %348 = sbr.rel (%p346) target = $region24
        $region23: #{tpu_custom_call.1} parent=11 // pred_region
          _
        $region24: #{tpu_custom_call.1} parent=11 // pred_fallthru
          _
        // Predicated region
        $region25: #{tpu_custom_call.1} parent=11 // pred_check
          %p349 = pneg %p171
        $region26: #{tpu_custom_call.1} parent=11 // pred_check_branch
          %351 = sbr.rel (%p349) target = $region28
        $region27: #{tpu_custom_call.1} parent=11 // pred_region
          _
        $region28: #{tpu_custom_call.1} parent=11 // pred_fallthru
          _
        // Predicated region
        $region29: #{tpu_custom_call.1} parent=11 // pred_check
          %p352 = pneg %p192
        $region30: #{tpu_custom_call.1} parent=11 // pred_check_branch
          %354 = sbr.rel (%p352) target = $region32
        $region31: #{tpu_custom_call.1} parent=11 // pred_region
          _
        $region32: #{tpu_custom_call.1} parent=11 // pred_fallthru
          _
        // Predicated region
        $region33: #{tpu_custom_call.1} parent=11 // pred_check
          %p355 = pneg %p213
        $region34: #{tpu_custom_call.1} parent=11 // pred_check_branch
          %357 = sbr.rel (%p355) target = $region36
        $region35: #{tpu_custom_call.1} parent=11 // pred_region
          _
        $region36: #{tpu_custom_call.1} parent=11 // pred_fallthru
          _
        // Predicated region
        $region37: #{tpu_custom_call.1} parent=11 // pred_check
          %p358 = pneg %p234
        $region38: #{tpu_custom_call.1} parent=11 // pred_check_branch
          %360 = sbr.rel (%p358) target = $region40
        $region39: #{tpu_custom_call.1} parent=11 // pred_region
          _
        $region40: #{tpu_custom_call.1} parent=11 // pred_fallthru
          _
        // Predicated region
        $region41: #{tpu_custom_call.1} parent=11 // pred_check
          %p361 = pneg %p255
        $region42: #{tpu_custom_call.1} parent=11 // pred_check_branch
          %363 = sbr.rel (%p361) target = $region44
        $region43: #{tpu_custom_call.1} parent=11 // pred_region
          _
        $region44: #{tpu_custom_call.1} parent=11 // pred_fallthru
          _
        // Predicated region
        $region45: #{tpu_custom_call.1} parent=11 // pred_check
          %p364 = pneg %p276
        $region46: #{tpu_custom_call.1} parent=11 // pred_check_branch
          %366 = sbr.rel (%p364) target = $region48
        $region47: #{tpu_custom_call.1} parent=11 // pred_region
          _
        $region48: #{tpu_custom_call.1} parent=11 // pred_fallthru
          _
        // Predicated region
        $region49: #{tpu_custom_call.1} parent=11 // pred_check
          %p367 = pneg %p297
        $region50: #{tpu_custom_call.1} parent=11 // pred_check_branch
          %369 = sbr.rel (%p367) target = $region52
        $region51: #{tpu_custom_call.1} parent=11 // pred_region
          _
        $region52: #{tpu_custom_call.1} parent=11 // pred_fallthru
          _
      $region12: #{tpu_custom_call.1} parent=5 // pred_fallthru
        _
      %p370 = scmp.lt.s32.totalorder %s21, 2
      // Predicated region
      $region53: #{tpu_custom_call.1} parent=5 // pred_check
        %p371 = pneg %p370
      $region54: #{tpu_custom_call.1} parent=5 // pred_check_branch
        %373 = sbr.rel (%p371) target = $region56
      $region55: #{tpu_custom_call.1} parent=5 // pred_region
        // Predicated region
        $region57: #{tpu_custom_call.1} parent=55 // pred_check
          %p374 = pneg %p55
        $region58: #{tpu_custom_call.1} parent=55 // pred_check_branch
          %376 = sbr.rel (%p374) target = $region60
        $region59: #{tpu_custom_call.1} parent=55 // pred_region
          %p377 = scmp.lt.s32.totalorder %s28, 1
          %s378 = scalar_select %p377, %s28, 1
          %p379 = scmp.lt.s32.totalorder %s29, 0
          %s380 = scalar_select %p379, %s29, 0
          %s381 = sadd.s32 %s380, %s378
          %s382 = smul.addr %s381, 8
          %s383 = scalar_lea.vmem %s0, %s382
        $region60: #{tpu_custom_call.1} parent=55 // pred_fallthru
          _
        // Predicated region
        $region61: #{tpu_custom_call.1} parent=55 // pred_check
          %p384 = pneg %p81
        $region62: #{tpu_custom_call.1} parent=55 // pred_check_branch
          %386 = sbr.rel (%p384) target = $region64
        $region63: #{tpu_custom_call.1} parent=55 // pred_region
          %p387 = scmp.lt.s32.totalorder %s28, 1
          %s388 = scalar_select %p387, %s28, 1
          %s389 = smul.addr %s388, 8
          %s390 = scalar_lea.vmem %s1, %s389
        $region64: #{tpu_custom_call.1} parent=55 // pred_fallthru
          _
      $region56: #{tpu_custom_call.1} parent=5 // pred_fallthru
        _
      %p391 = scmp.le.s32.totalorder 1, %s21
      %p392 = scmp.lt.s32.totalorder %s21, 3
      %p393 = pnand %p391, %p392
      %p394 = pneg %p393
      // Predicated region
      $region65: #{tpu_custom_call.1} parent=5 // pred_check
        _
      $region66: #{tpu_custom_call.1} parent=5 // pred_check_branch
        %396 = sbr.rel (%p393) target = $region68
      $region67: #{tpu_custom_call.1} parent=5 // pred_region
        %s397 = ssub.s32 %s21, 1
        %p398 = scmp.lt.s32.totalorder %s30, 1
        %s399 = scalar_select %p398, %s30, 1
        %p400 = scmp.lt.s32.totalorder %s31, 0
        %s401 = scalar_select %p400, %s31, 0
        %s402 = sadd.s32 %s401, %s399
        %s403 = smul.addr %s402, 8
        %s404 = scalar_lea.vmem %s0, %s403
        %p405 = pneg %p61
        %p406 = pneg %p58
        %p407 = scmp.lt.s32.totalorder %s30, 1
        %s408 = scalar_select %p407, %s30, 1
        %s409 = smul.addr %s408, 8
        %s410 = scalar_lea.vmem %s1, %s409
        %p411 = pneg %p87
        %p412 = pneg %p84
        %p413 = pneg %p108
        %p414 = pneg %p105
        %p415 = pneg %p129
        %p416 = pneg %p126
        %p417 = pneg %p150
        %p418 = pneg %p147
        %p419 = pneg %p171
        %p420 = pneg %p168
        %p421 = pneg %p192
        %p422 = pneg %p189
        %p423 = pneg %p213
        %p424 = pneg %p210
        %p425 = pneg %p234
        %p426 = pneg %p231
        %p427 = pneg %p255
        %p428 = pneg %p252
        %p429 = pneg %p276
        %p430 = pneg %p273
        %p431 = pneg %p297
        %p432 = pneg %p294
        %p433 = pneg %p325
        %p434 = pneg %p322
        %s435 = sand.u32 %s312, 1
        %s436 = scalar_lea.sflag [#allocation5], %s435
        %s437 = sand.u32 %s312, 1
        %s438 = smul.addr %s437, 8
        %s439 = scalar_lea.vmem [#allocation4], %s438
        %p440 = scmp.lt.s32.totalorder %s30, 1
        %s441 = scalar_select %p440, %s30, 1
        %p442 = scmp.lt.s32.totalorder %s31, 0
        %s443 = scalar_select %p442, %s31, 0
        %s444 = sadd.s32 %s443, %s441
        %s445 = smul.addr %s444, 8
        %s446 = scalar_lea.vmem %s0, %s445
        %p447 = scmp.lt.s32.totalorder %s30, 1
        %s448 = scalar_select %p447, %s30, 1
        %s449 = smul.addr %s448, 8
        %s450 = scalar_lea.vmem %s1, %s449
        %p451 = scmp.eq.s32.totalorder %s31, 0
        // Predicated region
        $region69: #{tpu_custom_call.1} parent=67 // pred_check
          %p452 = pneg %p451
        $region70: #{tpu_custom_call.1} parent=67 // pred_check_branch
          %454 = sbr.rel (%p452) target = $region72
        $region71: #{tpu_custom_call.1} parent=67 // pred_region
          %v455 = vld [vmem:[%s450] sm:$0xff]
          %v456 = vld [vmem:[%s2] sm:$0x1]
          %v457 = vld [vmem:[%s3] sm:$0x1]
          %vm458 = vcmask 261120
          %v459 = vsel %vm458, %v455, 0.0
          %460 = vadd.xlane.f32.xlu0 %v459
          %v461 = vpop.xlane.xlu0 %460
          %v462 = vrcp.pop 32.0
          %v463 = vmul.f32 %v461, %v462
          %v464 = vsub.f32 %v455, %v463
          %v465 = vmul.f32 %v464, %v464
          %v466 = vsel %vm458, %v465, 0.0
          %467 = vadd.xlane.f32.xlu0 %v466
          %v468 = vpop.xlane.xlu0 %467
          %v469 = vmul.f32 %v468, %v462
          %v470 = vadd.f32 %v469, 1e-05
          %v471 = vrsqrt.pop %v470
          %v472 = vmul.f32 %v464, %v471
          %v474 = vlaneseq
          %v475 = vshrl.u32 %v474, 7
          %v476 = vsub.s32 0, %v475
          %v477 = vrot.slane %v456, %v476
          %v479 = vmul.f32 %v472, %v477
          %v481 = vlaneseq
          %v482 = vshrl.u32 %v481, 7
          %v483 = vsub.s32 0, %v482
          %v484 = vrot.slane %v457, %v483
          %v486 = vadd.f32 %v479, %v484
          %v487 = vld [vmem:[%s7] sm:$0xff]
          %v488 = vld [vmem:[%s7 + $0x8] sm:$0xff]
          %v489 = vld [vmem:[%s7 + $0x10] sm:$0xff]
          %v490 = vld [vmem:[%s7 + $0x18] sm:$0xff]
          %v492 = vsel %vm458, %v486, 0
          %494 = vmatprep.subr.mxu0 0.0
          %495 = vmatpush1.msra.mxu0 0.0
          %496 = vmatprep.subr.mxu0 0.0
          %497 = vmatpush1.msra.mxu0 0.0
          %498 = vmatprep.subr.mxu0 0.0
          %499 = vmatpush1.msra.mxu0 0.0
          %500 = vmatprep.subr.mxu0 0.0
          %501 = vmatpush1.msra.mxu0 0.0
          %502 = vmatprep.subr.mxu0 0.0
          %503 = vmatpush1.msra.mxu0 0.0
          %504 = vmatprep.subr.mxu0 0.0
          %505 = vmatpush1.msra.mxu0 0.0
          %506 = vmatprep.subr.mxu0 0.0
          %507 = vmatpush1.msra.mxu0 0.0
          %508 = vmatprep.subr.mxu0 0.0
          %509 = vmatpush1.msra.mxu0 0.0
          %510 = vmatprep.subr.mxu0 0.0
          %511 = vmatpush1.msra.mxu0 0.0
          %512 = vmatprep.subr.mxu0 0.0
          %513 = vmatpush1.msra.mxu0 0.0
          %514 = vmatprep.subr.mxu0 0.0
          %515 = vmatpush1.msra.mxu0 0.0
          %516 = vmatprep.subr.mxu0 0.0
          %517 = vmatpush1.msra.mxu0 0.0
          %518 = vmatprep.subr.mxu0 0.0
          %519 = vmatpush1.msra.mxu0 %v490
          %520 = vmatprep.subr.mxu0 0.0
          %521 = vmatpush1.msra.mxu0 %v489
          %522 = vmatprep.subr.mxu0 0.0
          %523 = vmatpush1.msra.mxu0 %v488
          %524 = vmatprep.subr.mxu0 0.0
          %525 = vmatpush1.msra.mxu0 %v487
          %526 = vmatprep.subr.mxu0 0.0
          %527 = vmatpush2.msra.mxu0 0.0
          %528 = vmatprep.subr.mxu0 0.0
          %529 = vmatpush2.msra.mxu0 0.0
          %530 = vmatprep.subr.mxu0 0.0
          %531 = vmatpush2.msra.mxu0 0.0
          %532 = vmatprep.subr.mxu0 0.0
          %533 = vmatpush2.msra.mxu0 0.0
          %534 = vmatprep.subr.mxu0 0.0
          %535 = vmatpush2.msra.mxu0 0.0
          %536 = vmatprep.subr.mxu0 0.0
          %537 = vmatpush2.msra.mxu0 0.0
          %538 = vmatprep.subr.mxu0 0.0
          %539 = vmatpush2.msra.mxu0 0.0
          %540 = vmatprep.subr.mxu0 0.0
          %541 = vmatpush2.msra.mxu0 0.0
          %542 = vmatprep.subr.mxu0 0.0
          %543 = vmatpush2.msra.mxu0 0.0
          %544 = vmatprep.subr.mxu0 0.0
          %545 = vmatpush2.msra.mxu0 0.0
          %546 = vmatprep.subr.mxu0 0.0
          %547 = vmatpush2.msra.mxu0 0.0
          %548 = vmatprep.subr.mxu0 0.0
          %549 = vmatpush2.msra.mxu0 0.0
          %550 = vmatprep.subr.mxu0 0.0
          %551 = vmatpush2.msra.mxu0 0.0
          %552 = vmatprep.subr.mxu0 0.0
          %553 = vmatpush2.msra.mxu0 0.0
          %554 = vmatprep.subr.mxu0 0.0
          %555 = vmatpush2.msra.mxu0 0.0
          %556 = vmatprep.subr.mxu0 0.0
          %557 = vmatpush2.msra.mxu0 0.0
          %558 = vmatprep.mubr.f32.mxu0 0.0
          %559 = vmatmul.mubr.f32.gmra.mxu0 %v492
          %v560 = vpop.f32.mrf.mxu0
          %v561 = vadd.f32 0.0, %v560
          %v562 = vpop.f32.mrf.mxu0
          %563 = vdwg.mxu0
          %vm564 = vcmask 523264
          %565 = vst.msk [vmem:[#allocation2] sm:$0xff] %vm564, %v561
        $region72: #{tpu_custom_call.1} parent=67 // pred_fallthru
          _
        %v566 = vld [vmem:[%s446] sm:$0xff]
        %v567 = vld [vmem:[%s2] sm:$0x1]
        %v568 = vld [vmem:[%s3] sm:$0x1]
        %vm569 = vcmask 261120
        %v570 = vsel %vm569, %v566, 0.0
        %571 = vadd.xlane.f32.xlu0 %v570
        %v572 = vpop.xlane.xlu0 %571
        %v573 = vrcp.pop 32.0
        %v574 = vmul.f32 %v572, %v573
        %v575 = vsub.f32 %v566, %v574
        %v576 = vmul.f32 %v575, %v575
        %v577 = vsel %vm569, %v576, 0.0
        %578 = vadd.xlane.f32.xlu0 %v577
        %v579 = vpop.xlane.xlu0 %578
        %v580 = vmul.f32 %v579, %v573
        %v581 = vadd.f32 %v580, 1e-05
        %v582 = vrsqrt.pop %v581
        %v583 = vmul.f32 %v575, %v582
        %v585 = vlaneseq
        %v586 = vshrl.u32 %v585, 7
        %v587 = vsub.s32 0, %v586
        %v588 = vrot.slane %v567, %v587
        %v590 = vmul.f32 %v583, %v588
        %v592 = vlaneseq
        %v593 = vshrl.u32 %v592, 7
        %v594 = vsub.s32 0, %v593
        %v595 = vrot.slane %v568, %v594
        %v597 = vadd.f32 %v590, %v595
        %v598 = vld [vmem:[%s6] sm:$0xff]
        %v599 = vld [vmem:[%s6 + $0x8] sm:$0xff]
        %v600 = vld [vmem:[%s6 + $0x10] sm:$0xff]
        %v601 = vld [vmem:[%s6 + $0x18] sm:$0xff]
        %v603 = vsel %vm569, %v597, 0
        %605 = vmatprep.subr.mxu0 0.0
        %606 = vmatpush1.msra.mxu0 0.0
        %607 = vmatprep.subr.mxu0 0.0
        %608 = vmatpush1.msra.mxu0 0.0
        %609 = vmatprep.subr.mxu0 0.0
        %610 = vmatpush1.msra.mxu0 0.0
        %611 = vmatprep.subr.mxu0 0.0
        %612 = vmatpush1.msra.mxu0 0.0
        %613 = vmatprep.subr.mxu0 0.0
        %614 = vmatpush1.msra.mxu0 0.0
        %615 = vmatprep.subr.mxu0 0.0
        %616 = vmatpush1.msra.mxu0 0.0
        %617 = vmatprep.subr.mxu0 0.0
        %618 = vmatpush1.msra.mxu0 0.0
        %619 = vmatprep.subr.mxu0 0.0
        %620 = vmatpush1.msra.mxu0 0.0
        %621 = vmatprep.subr.mxu0 0.0
        %622 = vmatpush1.msra.mxu0 0.0
        %623 = vmatprep.subr.mxu0 0.0
        %624 = vmatpush1.msra.mxu0 0.0
        %625 = vmatprep.subr.mxu0 0.0
        %626 = vmatpush1.msra.mxu0 0.0
        %627 = vmatprep.subr.mxu0 0.0
        %628 = vmatpush1.msra.mxu0 0.0
        %629 = vmatprep.subr.mxu0 0.0
        %630 = vmatpush1.msra.mxu0 %v601
        %631 = vmatprep.subr.mxu0 0.0
        %632 = vmatpush1.msra.mxu0 %v600
        %633 = vmatprep.subr.mxu0 0.0
        %634 = vmatpush1.msra.mxu0 %v599
        %635 = vmatprep.subr.mxu0 0.0
        %636 = vmatpush1.msra.mxu0 %v598
        %637 = vmatprep.subr.mxu0 0.0
        %638 = vmatpush2.msra.mxu0 0.0
        %639 = vmatprep.subr.mxu0 0.0
        %640 = vmatpush2.msra.mxu0 0.0
        %641 = vmatprep.subr.mxu0 0.0
        %642 = vmatpush2.msra.mxu0 0.0
        %643 = vmatprep.subr.mxu0 0.0
        %644 = vmatpush2.msra.mxu0 0.0
        %645 = vmatprep.subr.mxu0 0.0
        %646 = vmatpush2.msra.mxu0 0.0
        %647 = vmatprep.subr.mxu0 0.0
        %648 = vmatpush2.msra.mxu0 0.0
        %649 = vmatprep.subr.mxu0 0.0
        %650 = vmatpush2.msra.mxu0 0.0
        %651 = vmatprep.subr.mxu0 0.0
        %652 = vmatpush2.msra.mxu0 0.0
        %653 = vmatprep.subr.mxu0 0.0
        %654 = vmatpush2.msra.mxu0 0.0
        %655 = vmatprep.subr.mxu0 0.0
        %656 = vmatpush2.msra.mxu0 0.0
        %657 = vmatprep.subr.mxu0 0.0
        %658 = vmatpush2.msra.mxu0 0.0
        %659 = vmatprep.subr.mxu0 0.0
        %660 = vmatpush2.msra.mxu0 0.0
        %661 = vmatprep.subr.mxu0 0.0
        %662 = vmatpush2.msra.mxu0 0.0
        %663 = vmatprep.subr.mxu0 0.0
        %664 = vmatpush2.msra.mxu0 0.0
        %665 = vmatprep.subr.mxu0 0.0
        %666 = vmatpush2.msra.mxu0 0.0
        %667 = vmatprep.subr.mxu0 0.0
        %668 = vmatpush2.msra.mxu0 0.0
        %669 = vmatprep.mubr.f32.mxu0 0.0
        %670 = vmatmul.mubr.f32.gmra.mxu0 %v603
        %v671 = vpop.f32.mrf.mxu0
        %v672 = vadd.f32 0.0, %v671
        %v673 = vpop.f32.mrf.mxu0
        %674 = vdwg.mxu0
        %v675 = vmul.f32 %v672, 0.17677669
        %s676 = smul.u32 %s31, 8
        %v677 = vlaneseq
        %v678 = vshrl.u32 %v677, 7
        %v679 = vstv %s676
        %v680 = vadd.s32 %v679, %v678
        %v681 = vlaneseq
        %v682 = vand.u32 %v681, 127
        %vm683 = vcmp.ge.s32.totalorder %v680, %v682
        %v684 = vld [vmem:[#allocation2] sm:$0xff]
        %vm685 = vcmask 64512
        %v687 = vsel %vm685, %v675, 0
        %v690 = vsel %vm685, %v684, 0
        %692 = vmatprep.subr.mxu0 0.0
        %693 = vmatpush1.xpose.msra.mxu0 0.0
        %694 = vmatprep.subr.mxu0 0.0
        %695 = vmatpush1.xpose.msra.mxu0 0.0
        %696 = vmatprep.subr.mxu0 0.0
        %697 = vmatpush1.xpose.msra.mxu0 0.0
        %698 = vmatprep.subr.mxu0 0.0
        %699 = vmatpush1.xpose.msra.mxu0 0.0
        %700 = vmatprep.subr.mxu0 0.0
        %701 = vmatpush1.xpose.msra.mxu0 0.0
        %702 = vmatprep.subr.mxu0 0.0
        %703 = vmatpush1.xpose.msra.mxu0 0.0
        %704 = vmatprep.subr.mxu0 0.0
        %705 = vmatpush1.xpose.msra.mxu0 0.0
        %706 = vmatprep.subr.mxu0 0.0
        %707 = vmatpush1.xpose.msra.mxu0 0.0
        %708 = vmatprep.subr.mxu0 0.0
        %709 = vmatpush1.xpose.msra.mxu0 0.0
        %710 = vmatprep.subr.mxu0 0.0
        %711 = vmatpush1.xpose.msra.mxu0 0.0
        %712 = vmatprep.subr.mxu0 0.0
        %713 = vmatpush1.xpose.msra.mxu0 0.0
        %714 = vmatprep.subr.mxu0 0.0
        %715 = vmatpush1.xpose.msra.mxu0 0.0
        %716 = vmatprep.subr.mxu0 0.0
        %717 = vmatpush1.xpose.msra.mxu0 0.0
        %718 = vmatprep.subr.mxu0 0.0
        %719 = vmatpush1.xpose.msra.mxu0 0.0
        %720 = vmatprep.subr.mxu0 0.0
        %721 = vmatpush1.xpose.msra.mxu0 0.0
        %722 = vmatprep.subr.mxu0 0.0
        %723 = vmatpush1.xpose.msra.mxu0 %v690
        %724 = vmatprep.subr.mxu0 0.0
        %725 = vmatpush2.xpose.msra.mxu0 0.0
        %726 = vmatprep.subr.mxu0 0.0
        %727 = vmatpush2.xpose.msra.mxu0 0.0
        %728 = vmatprep.subr.mxu0 0.0
        %729 = vmatpush2.xpose.msra.mxu0 0.0
        %730 = vmatprep.subr.mxu0 0.0
        %731 = vmatpush2.xpose.msra.mxu0 0.0
        %732 = vmatprep.subr.mxu0 0.0
        %733 = vmatpush2.xpose.msra.mxu0 0.0
        %734 = vmatprep.subr.mxu0 0.0
        %735 = vmatpush2.xpose.msra.mxu0 0.0
        %736 = vmatprep.subr.mxu0 0.0
        %737 = vmatpush2.xpose.msra.mxu0 0.0
        %738 = vmatprep.subr.mxu0 0.0
        %739 = vmatpush2.xpose.msra.mxu0 0.0
        %740 = vmatprep.subr.mxu0 0.0
        %741 = vmatpush2.xpose.msra.mxu0 0.0
        %742 = vmatprep.subr.mxu0 0.0
        %743 = vmatpush2.xpose.msra.mxu0 0.0
        %744 = vmatprep.subr.mxu0 0.0
        %745 = vmatpush2.xpose.msra.mxu0 0.0
        %746 = vmatprep.subr.mxu0 0.0
        %747 = vmatpush2.xpose.msra.mxu0 0.0
        %748 = vmatprep.subr.mxu0 0.0
        %749 = vmatpush2.xpose.msra.mxu0 0.0
        %750 = vmatprep.subr.mxu0 0.0
        %751 = vmatpush2.xpose.msra.mxu0 0.0
        %752 = vmatprep.subr.mxu0 0.0
        %753 = vmatpush2.xpose.msra.mxu0 0.0
        %754 = vmatprep.subr.mxu0 0.0
        %755 = vmatpush2.xpose.msra.mxu0 0.0
        %756 = vmatprep.mubr.f32.mxu0 0.0
        %757 = vmatmul.mubr.f32.gmra.mxu0 %v687
        %v758 = vpop.f32.mrf.mxu0
        %v759 = vadd.f32 0.0, %v758
        %v760 = vpop.f32.mrf.mxu0
        %761 = vdwg.mxu0
        %v762 = vsel %vm683, %v759, -inf
        %v763 = vsel %vm685, %v762, -inf
        %764 = vmax.xlane.f32.xlu0 %v763
        %v765 = vpop.xlane.xlu0 %764
        %v766 = vsub.f32 %v762, %v765
        %v767 = vmul.f32 %v766, 1.442695
        %v768 = vpow.pop %v767
        %v769 = vsel %vm685, %v768, 0.0
        %770 = vadd.xlane.f32.xlu0 %v769
        %v771 = vpop.xlane.xlu0 %770
        %v772 = vrcp.pop %v771
        %v773 = vmul.f32 %v768, %v772
        %774 = vrot.lane.b32.xlu0 %v684, 96
        %v775 = vpop.permute.xlu0 %774
        %v778 = vsel %vm685, %v773, 0
        %780 = vmatprep.subr.mxu0 0.0
        %781 = vmatpush1.msra.mxu0 0.0
        %782 = vmatprep.subr.mxu0 0.0
        %783 = vmatpush1.msra.mxu0 0.0
        %784 = vmatprep.subr.mxu0 0.0
        %785 = vmatpush1.msra.mxu0 0.0
        %786 = vmatprep.subr.mxu0 0.0
        %787 = vmatpush1.msra.mxu0 0.0
        %788 = vmatprep.subr.mxu0 0.0
        %789 = vmatpush1.msra.mxu0 0.0
        %790 = vmatprep.subr.mxu0 0.0
        %791 = vmatpush1.msra.mxu0 0.0
        %792 = vmatprep.subr.mxu0 0.0
        %793 = vmatpush1.msra.mxu0 0.0
        %794 = vmatprep.subr.mxu0 0.0
        %795 = vmatpush1.msra.mxu0 0.0
        %796 = vmatprep.subr.mxu0 0.0
        %797 = vmatpush1.msra.mxu0 0.0
        %798 = vmatprep.subr.mxu0 0.0
        %799 = vmatpush1.msra.mxu0 0.0
        %800 = vmatprep.subr.mxu0 0.0
        %801 = vmatpush1.msra.mxu0 0.0
        %802 = vmatprep.subr.mxu0 0.0
        %803 = vmatpush1.msra.mxu0 0.0
        %804 = vmatprep.subr.mxu0 0.0
        %805 = vmatpush1.msra.mxu0 0.0
        %806 = vmatprep.subr.mxu0 0.0
        %807 = vmatpush1.msra.mxu0 0.0
        %808 = vmatprep.subr.mxu0 0.0
        %809 = vmatpush1.msra.mxu0 0.0
        %810 = vmatprep.subr.mxu0 0.0
        %811 = vmatpush1.msra.mxu0 %v775
        %812 = vmatprep.subr.mxu0 0.0
        %813 = vmatpush2.msra.mxu0 0.0
        %814 = vmatprep.subr.mxu0 0.0
        %815 = vmatpush2.msra.mxu0 0.0
        %816 = vmatprep.subr.mxu0 0.0
        %817 = vmatpush2.msra.mxu0 0.0
        %818 = vmatprep.subr.mxu0 0.0
        %819 = vmatpush2.msra.mxu0 0.0
        %820 = vmatprep.subr.mxu0 0.0
        %821 = vmatpush2.msra.mxu0 0.0
        %822 = vmatprep.subr.mxu0 0.0
        %823 = vmatpush2.msra.mxu0 0.0
        %824 = vmatprep.subr.mxu0 0.0
        %825 = vmatpush2.msra.mxu0 0.0
        %826 = vmatprep.subr.mxu0 0.0
        %827 = vmatpush2.msra.mxu0 0.0
        %828 = vmatprep.subr.mxu0 0.0
        %829 = vmatpush2.msra.mxu0 0.0
        %830 = vmatprep.subr.mxu0 0.0
        %831 = vmatpush2.msra.mxu0 0.0
        %832 = vmatprep.subr.mxu0 0.0
        %833 = vmatpush2.msra.mxu0 0.0
        %834 = vmatprep.subr.mxu0 0.0
        %835 = vmatpush2.msra.mxu0 0.0
        %836 = vmatprep.subr.mxu0 0.0
        %837 = vmatpush2.msra.mxu0 0.0
        %838 = vmatprep.subr.mxu0 0.0
        %839 = vmatpush2.msra.mxu0 0.0
        %840 = vmatprep.subr.mxu0 0.0
        %841 = vmatpush2.msra.mxu0 0.0
        %842 = vmatprep.subr.mxu0 0.0
        %843 = vmatpush2.msra.mxu0 0.0
        %844 = vmatprep.mubr.f32.mxu0 0.0
        %845 = vmatmul.mubr.f32.gmra.mxu0 %v778
        %v846 = vpop.f32.mrf.mxu0
        %v847 = vadd.f32 0.0, %v846
        %v848 = vpop.f32.mrf.mxu0
        %849 = vdwg.mxu0
        %850 = vst.msk [vmem:[#allocation3] sm:$0xff] %vm685, %v847
        %v851 = vld [vmem:[#allocation2] sm:$0xff]
        %852 = vrot.lane.b32.xlu0 %v675, 120
        %v853 = vpop.permute.xlu0 %852
        %855 = vrot.lane.b32.xlu0 %v851, 120
        %v856 = vpop.permute.xlu0 %855
        %v857 = vsel %vm685, %v853, 0
        %v859 = vsel %vm685, %v856, 0
        %861 = vmatprep.subr.mxu0 0.0
        %862 = vmatpush1.xpose.msra.mxu0 0.0
        %863 = vmatprep.subr.mxu0 0.0
        %864 = vmatpush1.xpose.msra.mxu0 0.0
        %865 = vmatprep.subr.mxu0 0.0
        %866 = vmatpush1.xpose.msra.mxu0 0.0
        %867 = vmatprep.subr.mxu0 0.0
        %868 = vmatpush1.xpose.msra.mxu0 0.0
        %869 = vmatprep.subr.mxu0 0.0
        %870 = vmatpush1.xpose.msra.mxu0 0.0
        %871 = vmatprep.subr.mxu0 0.0
        %872 = vmatpush1.xpose.msra.mxu0 0.0
        %873 = vmatprep.subr.mxu0 0.0
        %874 = vmatpush1.xpose.msra.mxu0 0.0
        %875 = vmatprep.subr.mxu0 0.0
        %876 = vmatpush1.xpose.msra.mxu0 0.0
        %877 = vmatprep.subr.mxu0 0.0
        %878 = vmatpush1.xpose.msra.mxu0 0.0
        %879 = vmatprep.subr.mxu0 0.0
        %880 = vmatpush1.xpose.msra.mxu0 0.0
        %881 = vmatprep.subr.mxu0 0.0
        %882 = vmatpush1.xpose.msra.mxu0 0.0
        %883 = vmatprep.subr.mxu0 0.0
        %884 = vmatpush1.xpose.msra.mxu0 0.0
        %885 = vmatprep.subr.mxu0 0.0
        %886 = vmatpush1.xpose.msra.mxu0 0.0
        %887 = vmatprep.subr.mxu0 0.0
        %888 = vmatpush1.xpose.msra.mxu0 0.0
        %889 = vmatprep.subr.mxu0 0.0
        %890 = vmatpush1.xpose.msra.mxu0 0.0
        %891 = vmatprep.subr.mxu0 0.0
        %892 = vmatpush1.xpose.msra.mxu0 %v859
        %893 = vmatprep.subr.mxu0 0.0
        %894 = vmatpush2.xpose.msra.mxu0 0.0
        %895 = vmatprep.subr.mxu0 0.0
        %896 = vmatpush2.xpose.msra.mxu0 0.0
        %897 = vmatprep.subr.mxu0 0.0
        %898 = vmatpush2.xpose.msra.mxu0 0.0
        %899 = vmatprep.subr.mxu0 0.0
        %900 = vmatpush2.xpose.msra.mxu0 0.0
        %901 = vmatprep.subr.mxu0 0.0
        %902 = vmatpush2.xpose.msra.mxu0 0.0
        %903 = vmatprep.subr.mxu0 0.0
        %904 = vmatpush2.xpose.msra.mxu0 0.0
        %905 = vmatprep.subr.mxu0 0.0
        %906 = vmatpush2.xpose.msra.mxu0 0.0
        %907 = vmatprep.subr.mxu0 0.0
        %908 = vmatpush2.xpose.msra.mxu0 0.0
        %909 = vmatprep.subr.mxu0 0.0
        %910 = vmatpush2.xpose.msra.mxu0 0.0
        %911 = vmatprep.subr.mxu0 0.0
        %912 = vmatpush2.xpose.msra.mxu0 0.0
        %913 = vmatprep.subr.mxu0 0.0
        %914 = vmatpush2.xpose.msra.mxu0 0.0
        %915 = vmatprep.subr.mxu0 0.0
        %916 = vmatpush2.xpose.msra.mxu0 0.0
        %917 = vmatprep.subr.mxu0 0.0
        %918 = vmatpush2.xpose.msra.mxu0 0.0
        %919 = vmatprep.subr.mxu0 0.0
        %920 = vmatpush2.xpose.msra.mxu0 0.0
        %921 = vmatprep.subr.mxu0 0.0
        %922 = vmatpush2.xpose.msra.mxu0 0.0
        %923 = vmatprep.subr.mxu0 0.0
        %924 = vmatpush2.xpose.msra.mxu0 0.0
        %925 = vmatprep.mubr.f32.mxu0 0.0
        %926 = vmatmul.mubr.f32.gmra.mxu0 %v857
        %v927 = vpop.f32.mrf.mxu0
        %v928 = vadd.f32 0.0, %v927
        %v929 = vpop.f32.mrf.mxu0
        %930 = vdwg.mxu0
        %v931 = vsel %vm683, %v928, -inf
        %v932 = vsel %vm685, %v931, -inf
        %933 = vmax.xlane.f32.xlu0 %v932
        %v934 = vpop.xlane.xlu0 %933
        %v935 = vsub.f32 %v931, %v934
        %v936 = vmul.f32 %v935, 1.442695
        %v937 = vpow.pop %v936
        %v938 = vsel %vm685, %v937, 0.0
        %939 = vadd.xlane.f32.xlu0 %v938
        %v940 = vpop.xlane.xlu0 %939
        %v941 = vrcp.pop %v940
        %v942 = vmul.f32 %v937, %v941
        %943 = vrot.lane.b32.xlu0 %v851, 88
        %v944 = vpop.permute.xlu0 %943
        %v947 = vsel %vm685, %v942, 0
        %949 = vmatprep.subr.mxu0 0.0
        %950 = vmatpush1.msra.mxu0 0.0
        %951 = vmatprep.subr.mxu0 0.0
        %952 = vmatpush1.msra.mxu0 0.0
        %953 = vmatprep.subr.mxu0 0.0
        %954 = vmatpush1.msra.mxu0 0.0
        %955 = vmatprep.subr.mxu0 0.0
        %956 = vmatpush1.msra.mxu0 0.0
        %957 = vmatprep.subr.mxu0 0.0
        %958 = vmatpush1.msra.mxu0 0.0
        %959 = vmatprep.subr.mxu0 0.0
        %960 = vmatpush1.msra.mxu0 0.0
        %961 = vmatprep.subr.mxu0 0.0
        %962 = vmatpush1.msra.mxu0 0.0
        %963 = vmatprep.subr.mxu0 0.0
        %964 = vmatpush1.msra.mxu0 0.0
        %965 = vmatprep.subr.mxu0 0.0
        %966 = vmatpush1.msra.mxu0 0.0
        %967 = vmatprep.subr.mxu0 0.0
        %968 = vmatpush1.msra.mxu0 0.0
        %969 = vmatprep.subr.mxu0 0.0
        %970 = vmatpush1.msra.mxu0 0.0
        %971 = vmatprep.subr.mxu0 0.0
        %972 = vmatpush1.msra.mxu0 0.0
        %973 = vmatprep.subr.mxu0 0.0
        %974 = vmatpush1.msra.mxu0 0.0
        %975 = vmatprep.subr.mxu0 0.0
        %976 = vmatpush1.msra.mxu0 0.0
        %977 = vmatprep.subr.mxu0 0.0
        %978 = vmatpush1.msra.mxu0 0.0
        %979 = vmatprep.subr.mxu0 0.0
        %980 = vmatpush1.msra.mxu0 %v944
        %981 = vmatprep.subr.mxu0 0.0
        %982 = vmatpush2.msra.mxu0 0.0
        %983 = vmatprep.subr.mxu0 0.0
        %984 = vmatpush2.msra.mxu0 0.0
        %985 = vmatprep.subr.mxu0 0.0
        %986 = vmatpush2.msra.mxu0 0.0
        %987 = vmatprep.subr.mxu0 0.0
        %988 = vmatpush2.msra.mxu0 0.0
        %989 = vmatprep.subr.mxu0 0.0
        %990 = vmatpush2.msra.mxu0 0.0
        %991 = vmatprep.subr.mxu0 0.0
        %992 = vmatpush2.msra.mxu0 0.0
        %993 = vmatprep.subr.mxu0 0.0
        %994 = vmatpush2.msra.mxu0 0.0
        %995 = vmatprep.subr.mxu0 0.0
        %996 = vmatpush2.msra.mxu0 0.0
        %997 = vmatprep.subr.mxu0 0.0
        %998 = vmatpush2.msra.mxu0 0.0
        %999 = vmatprep.subr.mxu0 0.0
        %1000 = vmatpush2.msra.mxu0 0.0
        %1001 = vmatprep.subr.mxu0 0.0
        %1002 = vmatpush2.msra.mxu0 0.0
        %1003 = vmatprep.subr.mxu0 0.0
        %1004 = vmatpush2.msra.mxu0 0.0
        %1005 = vmatprep.subr.mxu0 0.0
        %1006 = vmatpush2.msra.mxu0 0.0
        %1007 = vmatprep.subr.mxu0 0.0
        %1008 = vmatpush2.msra.mxu0 0.0
        %1009 = vmatprep.subr.mxu0 0.0
        %1010 = vmatpush2.msra.mxu0 0.0
        %1011 = vmatprep.subr.mxu0 0.0
        %1012 = vmatpush2.msra.mxu0 0.0
        %1013 = vmatprep.mubr.f32.mxu0 0.0
        %1014 = vmatmul.mubr.f32.gmra.mxu0 %v947
        %v1015 = vpop.f32.mrf.mxu0
        %v1016 = vadd.f32 0.0, %v1015
        %v1017 = vpop.f32.mrf.mxu0
        %1018 = vdwg.mxu0
        %1020 = vrot.lane.b32.xlu0 %v1016, 8
        %v1021 = vpop.permute.xlu0 %1020
        %vm1023 = vcmask 130112
        %1024 = vst.msk [vmem:[#allocation3] sm:$0xff] %vm1023, %v1021
        %v1025 = vld [vmem:[#allocation2] sm:$0xff]
        %1026 = vrot.lane.b32.xlu0 %v675, 112
        %v1027 = vpop.permute.xlu0 %1026
        %1029 = vrot.lane.b32.xlu0 %v1025, 112
        %v1030 = vpop.permute.xlu0 %1029
        %v1031 = vsel %vm685, %v1027, 0
        %v1033 = vsel %vm685, %v1030, 0
        %1035 = vmatprep.subr.mxu0 0.0
        %1036 = vmatpush1.xpose.msra.mxu0 0.0
        %1037 = vmatprep.subr.mxu0 0.0
        %1038 = vmatpush1.xpose.msra.mxu0 0.0
        %1039 = vmatprep.subr.mxu0 0.0
        %1040 = vmatpush1.xpose.msra.mxu0 0.0
        %1041 = vmatprep.subr.mxu0 0.0
        %1042 = vmatpush1.xpose.msra.mxu0 0.0
        %1043 = vmatprep.subr.mxu0 0.0
        %1044 = vmatpush1.xpose.msra.mxu0 0.0
        %1045 = vmatprep.subr.mxu0 0.0
        %1046 = vmatpush1.xpose.msra.mxu0 0.0
        %1047 = vmatprep.subr.mxu0 0.0
        %1048 = vmatpush1.xpose.msra.mxu0 0.0
        %1049 = vmatprep.subr.mxu0 0.0
        %1050 = vmatpush1.xpose.msra.mxu0 0.0
        %1051 = vmatprep.subr.mxu0 0.0
        %1052 = vmatpush1.xpose.msra.mxu0 0.0
        %1053 = vmatprep.subr.mxu0 0.0
        %1054 = vmatpush1.xpose.msra.mxu0 0.0
        %1055 = vmatprep.subr.mxu0 0.0
        %1056 = vmatpush1.xpose.msra.mxu0 0.0
        %1057 = vmatprep.subr.mxu0 0.0
        %1058 = vmatpush1.xpose.msra.mxu0 0.0
        %1059 = vmatprep.subr.mxu0 0.0
        %1060 = vmatpush1.xpose.msra.mxu0 0.0
        %1061 = vmatprep.subr.mxu0 0.0
        %1062 = vmatpush1.xpose.msra.mxu0 0.0
        %1063 = vmatprep.subr.mxu0 0.0
        %1064 = vmatpush1.xpose.msra.mxu0 0.0
        %1065 = vmatprep.subr.mxu0 0.0
        %1066 = vmatpush1.xpose.msra.mxu0 %v1033
        %1067 = vmatprep.subr.mxu0 0.0
        %1068 = vmatpush2.xpose.msra.mxu0 0.0
        %1069 = vmatprep.subr.mxu0 0.0
        %1070 = vmatpush2.xpose.msra.mxu0 0.0
        %1071 = vmatprep.subr.mxu0 0.0
        %1072 = vmatpush2.xpose.msra.mxu0 0.0
        %1073 = vmatprep.subr.mxu0 0.0
        %1074 = vmatpush2.xpose.msra.mxu0 0.0
        %1075 = vmatprep.subr.mxu0 0.0
        %1076 = vmatpush2.xpose.msra.mxu0 0.0
        %1077 = vmatprep.subr.mxu0 0.0
        %1078 = vmatpush2.xpose.msra.mxu0 0.0
        %1079 = vmatprep.subr.mxu0 0.0
        %1080 = vmatpush2.xpose.msra.mxu0 0.0
        %1081 = vmatprep.subr.mxu0 0.0
        %1082 = vmatpush2.xpose.msra.mxu0 0.0
        %1083 = vmatprep.subr.mxu0 0.0
        %1084 = vmatpush2.xpose.msra.mxu0 0.0
        %1085 = vmatprep.subr.mxu0 0.0
        %1086 = vmatpush2.xpose.msra.mxu0 0.0
        %1087 = vmatprep.subr.mxu0 0.0
        %1088 = vmatpush2.xpose.msra.mxu0 0.0
        %1089 = vmatprep.subr.mxu0 0.0
        %1090 = vmatpush2.xpose.msra.mxu0 0.0
        %1091 = vmatprep.subr.mxu0 0.0
        %1092 = vmatpush2.xpose.msra.mxu0 0.0
        %1093 = vmatprep.subr.mxu0 0.0
        %1094 = vmatpush2.xpose.msra.mxu0 0.0
        %1095 = vmatprep.subr.mxu0 0.0
        %1096 = vmatpush2.xpose.msra.mxu0 0.0
        %1097 = vmatprep.subr.mxu0 0.0
        %1098 = vmatpush2.xpose.msra.mxu0 0.0
        %1099 = vmatprep.mubr.f32.mxu0 0.0
        %1100 = vmatmul.mubr.f32.gmra.mxu0 %v1031
        %v1101 = vpop.f32.mrf.mxu0
        %v1102 = vadd.f32 0.0, %v1101
        %v1103 = vpop.f32.mrf.mxu0
        %1104 = vdwg.mxu0
        %v1105 = vsel %vm683, %v1102, -inf
        %v1106 = vsel %vm685, %v1105, -inf
        %1107 = vmax.xlane.f32.xlu0 %v1106
        %v1108 = vpop.xlane.xlu0 %1107
        %v1109 = vsub.f32 %v1105, %v1108
        %v1110 = vmul.f32 %v1109, 1.442695
        %v1111 = vpow.pop %v1110
        %v1112 = vsel %vm685, %v1111, 0.0
        %1113 = vadd.xlane.f32.xlu0 %v1112
        %v1114 = vpop.xlane.xlu0 %1113
        %v1115 = vrcp.pop %v1114
        %v1116 = vmul.f32 %v1111, %v1115
        %1117 = vrot.lane.b32.xlu0 %v1025, 80
        %v1118 = vpop.permute.xlu0 %1117
        %v1121 = vsel %vm685, %v1116, 0
        %1123 = vmatprep.subr.mxu0 0.0
        %1124 = vmatpush1.msra.mxu0 0.0
        %1125 = vmatprep.subr.mxu0 0.0
        %1126 = vmatpush1.msra.mxu0 0.0
        %1127 = vmatprep.subr.mxu0 0.0
        %1128 = vmatpush1.msra.mxu0 0.0
        %1129 = vmatprep.subr.mxu0 0.0
        %1130 = vmatpush1.msra.mxu0 0.0
        %1131 = vmatprep.subr.mxu0 0.0
        %1132 = vmatpush1.msra.mxu0 0.0
        %1133 = vmatprep.subr.mxu0 0.0
        %1134 = vmatpush1.msra.mxu0 0.0
        %1135 = vmatprep.subr.mxu0 0.0
        %1136 = vmatpush1.msra.mxu0 0.0
        %1137 = vmatprep.subr.mxu0 0.0
        %1138 = vmatpush1.msra.mxu0 0.0
        %1139 = vmatprep.subr.mxu0 0.0
        %1140 = vmatpush1.msra.mxu0 0.0
        %1141 = vmatprep.subr.mxu0 0.0
        %1142 = vmatpush1.msra.mxu0 0.0
        %1143 = vmatprep.subr.mxu0 0.0
        %1144 = vmatpush1.msra.mxu0 0.0
        %1145 = vmatprep.subr.mxu0 0.0
        %1146 = vmatpush1.msra.mxu0 0.0
        %1147 = vmatprep.subr.mxu0 0.0
        %1148 = vmatpush1.msra.mxu0 0.0
        %1149 = vmatprep.subr.mxu0 0.0
        %1150 = vmatpush1.msra.mxu0 0.0
        %1151 = vmatprep.subr.mxu0 0.0
        %1152 = vmatpush1.msra.mxu0 0.0
        %1153 = vmatprep.subr.mxu0 0.0
        %1154 = vmatpush1.msra.mxu0 %v1118
        %1155 = vmatprep.subr.mxu0 0.0
        %1156 = vmatpush2.msra.mxu0 0.0
        %1157 = vmatprep.subr.mxu0 0.0
        %1158 = vmatpush2.msra.mxu0 0.0
        %1159 = vmatprep.subr.mxu0 0.0
        %1160 = vmatpush2.msra.mxu0 0.0
        %1161 = vmatprep.subr.mxu0 0.0
        %1162 = vmatpush2.msra.mxu0 0.0
        %1163 = vmatprep.subr.mxu0 0.0
        %1164 = vmatpush2.msra.mxu0 0.0
        %1165 = vmatprep.subr.mxu0 0.0
        %1166 = vmatpush2.msra.mxu0 0.0
        %1167 = vmatprep.subr.mxu0 0.0
        %1168 = vmatpush2.msra.mxu0 0.0
        %1169 = vmatprep.subr.mxu0 0.0
        %1170 = vmatpush2.msra.mxu0 0.0
        %1171 = vmatprep.subr.mxu0 0.0
        %1172 = vmatpush2.msra.mxu0 0.0
        %1173 = vmatprep.subr.mxu0 0.0
        %1174 = vmatpush2.msra.mxu0 0.0
        %1175 = vmatprep.subr.mxu0 0.0
        %1176 = vmatpush2.msra.mxu0 0.0
        %1177 = vmatprep.subr.mxu0 0.0
        %1178 = vmatpush2.msra.mxu0 0.0
        %1179 = vmatprep.subr.mxu0 0.0
        %1180 = vmatpush2.msra.mxu0 0.0
        %1181 = vmatprep.subr.mxu0 0.0
        %1182 = vmatpush2.msra.mxu0 0.0
        %1183 = vmatprep.subr.mxu0 0.0
        %1184 = vmatpush2.msra.mxu0 0.0
        %1185 = vmatprep.subr.mxu0 0.0
        %1186 = vmatpush2.msra.mxu0 0.0
        %1187 = vmatprep.mubr.f32.mxu0 0.0
        %1188 = vmatmul.mubr.f32.gmra.mxu0 %v1121
        %v1189 = vpop.f32.mrf.mxu0
        %v1190 = vadd.f32 0.0, %v1189
        %v1191 = vpop.f32.mrf.mxu0
        %1192 = vdwg.mxu0
        %1194 = vrot.lane.b32.xlu0 %v1190, 16
        %v1195 = vpop.permute.xlu0 %1194
        %vm1197 = vcmask 195712
        %1198 = vst.msk [vmem:[#allocation3] sm:$0xff] %vm1197, %v1195
        %v1199 = vld [vmem:[#allocation2] sm:$0xff]
        %1200 = vrot.lane.b32.xlu0 %v675, 104
        %v1201 = vpop.permute.xlu0 %1200
        %1203 = vrot.lane.b32.xlu0 %v1199, 104
        %v1204 = vpop.permute.xlu0 %1203
        %v1205 = vsel %vm685, %v1201, 0
        %v1207 = vsel %vm685, %v1204, 0
        %1209 = vmatprep.subr.mxu0 0.0
        %1210 = vmatpush1.xpose.msra.mxu0 0.0
        %1211 = vmatprep.subr.mxu0 0.0
        %1212 = vmatpush1.xpose.msra.mxu0 0.0
        %1213 = vmatprep.subr.mxu0 0.0
        %1214 = vmatpush1.xpose.msra.mxu0 0.0
        %1215 = vmatprep.subr.mxu0 0.0
        %1216 = vmatpush1.xpose.msra.mxu0 0.0
        %1217 = vmatprep.subr.mxu0 0.0
        %1218 = vmatpush1.xpose.msra.mxu0 0.0
        %1219 = vmatprep.subr.mxu0 0.0
        %1220 = vmatpush1.xpose.msra.mxu0 0.0
        %1221 = vmatprep.subr.mxu0 0.0
        %1222 = vmatpush1.xpose.msra.mxu0 0.0
        %1223 = vmatprep.subr.mxu0 0.0
        %1224 = vmatpush1.xpose.msra.mxu0 0.0
        %1225 = vmatprep.subr.mxu0 0.0
        %1226 = vmatpush1.xpose.msra.mxu0 0.0
        %1227 = vmatprep.subr.mxu0 0.0
        %1228 = vmatpush1.xpose.msra.mxu0 0.0
        %1229 = vmatprep.subr.mxu0 0.0
        %1230 = vmatpush1.xpose.msra.mxu0 0.0
        %1231 = vmatprep.subr.mxu0 0.0
        %1232 = vmatpush1.xpose.msra.mxu0 0.0
        %1233 = vmatprep.subr.mxu0 0.0
        %1234 = vmatpush1.xpose.msra.mxu0 0.0
        %1235 = vmatprep.subr.mxu0 0.0
        %1236 = vmatpush1.xpose.msra.mxu0 0.0
        %1237 = vmatprep.subr.mxu0 0.0
        %1238 = vmatpush1.xpose.msra.mxu0 0.0
        %1239 = vmatprep.subr.mxu0 0.0
        %1240 = vmatpush1.xpose.msra.mxu0 %v1207
        %1241 = vmatprep.subr.mxu0 0.0
        %1242 = vmatpush2.xpose.msra.mxu0 0.0
        %1243 = vmatprep.subr.mxu0 0.0
        %1244 = vmatpush2.xpose.msra.mxu0 0.0
        %1245 = vmatprep.subr.mxu0 0.0
        %1246 = vmatpush2.xpose.msra.mxu0 0.0
        %1247 = vmatprep.subr.mxu0 0.0
        %1248 = vmatpush2.xpose.msra.mxu0 0.0
        %1249 = vmatprep.subr.mxu0 0.0
        %1250 = vmatpush2.xpose.msra.mxu0 0.0
        %1251 = vmatprep.subr.mxu0 0.0
        %1252 = vmatpush2.xpose.msra.mxu0 0.0
        %1253 = vmatprep.subr.mxu0 0.0
        %1254 = vmatpush2.xpose.msra.mxu0 0.0
        %1255 = vmatprep.subr.mxu0 0.0
        %1256 = vmatpush2.xpose.msra.mxu0 0.0
        %1257 = vmatprep.subr.mxu0 0.0
        %1258 = vmatpush2.xpose.msra.mxu0 0.0
        %1259 = vmatprep.subr.mxu0 0.0
        %1260 = vmatpush2.xpose.msra.mxu0 0.0
        %1261 = vmatprep.subr.mxu0 0.0
        %1262 = vmatpush2.xpose.msra.mxu0 0.0
        %1263 = vmatprep.subr.mxu0 0.0
        %1264 = vmatpush2.xpose.msra.mxu0 0.0
        %1265 = vmatprep.subr.mxu0 0.0
        %1266 = vmatpush2.xpose.msra.mxu0 0.0
        %1267 = vmatprep.subr.mxu0 0.0
        %1268 = vmatpush2.xpose.msra.mxu0 0.0
        %1269 = vmatprep.subr.mxu0 0.0
        %1270 = vmatpush2.xpose.msra.mxu0 0.0
        %1271 = vmatprep.subr.mxu0 0.0
        %1272 = vmatpush2.xpose.msra.mxu0 0.0
        %1273 = vmatprep.mubr.f32.mxu0 0.0
        %1274 = vmatmul.mubr.f32.gmra.mxu0 %v1205
        %v1275 = vpop.f32.mrf.mxu0
        %v1276 = vadd.f32 0.0, %v1275
        %v1277 = vpop.f32.mrf.mxu0
        %1278 = vdwg.mxu0
        %v1279 = vsel %vm683, %v1276, -inf
        %v1280 = vsel %vm685, %v1279, -inf
        %1281 = vmax.xlane.f32.xlu0 %v1280
        %v1282 = vpop.xlane.xlu0 %1281
        %v1283 = vsub.f32 %v1279, %v1282
        %v1284 = vmul.f32 %v1283, 1.442695
        %v1285 = vpow.pop %v1284
        %v1286 = vsel %vm685, %v1285, 0.0
        %1287 = vadd.xlane.f32.xlu0 %v1286
        %v1288 = vpop.xlane.xlu0 %1287
        %v1289 = vrcp.pop %v1288
        %v1290 = vmul.f32 %v1285, %v1289
        %1291 = vrot.lane.b32.xlu0 %v1199, 72
        %v1292 = vpop.permute.xlu0 %1291
        %v1295 = vsel %vm685, %v1290, 0
        %1297 = vmatprep.subr.mxu0 0.0
        %1298 = vmatpush1.msra.mxu0 0.0
        %1299 = vmatprep.subr.mxu0 0.0
        %1300 = vmatpush1.msra.mxu0 0.0
        %1301 = vmatprep.subr.mxu0 0.0
        %1302 = vmatpush1.msra.mxu0 0.0
        %1303 = vmatprep.subr.mxu0 0.0
        %1304 = vmatpush1.msra.mxu0 0.0
        %1305 = vmatprep.subr.mxu0 0.0
        %1306 = vmatpush1.msra.mxu0 0.0
        %1307 = vmatprep.subr.mxu0 0.0
        %1308 = vmatpush1.msra.mxu0 0.0
        %1309 = vmatprep.subr.mxu0 0.0
        %1310 = vmatpush1.msra.mxu0 0.0
        %1311 = vmatprep.subr.mxu0 0.0
        %1312 = vmatpush1.msra.mxu0 0.0
        %1313 = vmatprep.subr.mxu0 0.0
        %1314 = vmatpush1.msra.mxu0 0.0
        %1315 = vmatprep.subr.mxu0 0.0
        %1316 = vmatpush1.msra.mxu0 0.0
        %1317 = vmatprep.subr.mxu0 0.0
        %1318 = vmatpush1.msra.mxu0 0.0
        %1319 = vmatprep.subr.mxu0 0.0
        %1320 = vmatpush1.msra.mxu0 0.0
        %1321 = vmatprep.subr.mxu0 0.0
        %1322 = vmatpush1.msra.mxu0 0.0
        %1323 = vmatprep.subr.mxu0 0.0
        %1324 = vmatpush1.msra.mxu0 0.0
        %1325 = vmatprep.subr.mxu0 0.0
        %1326 = vmatpush1.msra.mxu0 0.0
        %1327 = vmatprep.subr.mxu0 0.0
        %1328 = vmatpush1.msra.mxu0 %v1292
        %1329 = vmatprep.subr.mxu0 0.0
        %1330 = vmatpush2.msra.mxu0 0.0
        %1331 = vmatprep.subr.mxu0 0.0
        %1332 = vmatpush2.msra.mxu0 0.0
        %1333 = vmatprep.subr.mxu0 0.0
        %1334 = vmatpush2.msra.mxu0 0.0
        %1335 = vmatprep.subr.mxu0 0.0
        %1336 = vmatpush2.msra.mxu0 0.0
        %1337 = vmatprep.subr.mxu0 0.0
        %1338 = vmatpush2.msra.mxu0 0.0
        %1339 = vmatprep.subr.mxu0 0.0
        %1340 = vmatpush2.msra.mxu0 0.0
        %1341 = vmatprep.subr.mxu0 0.0
        %1342 = vmatpush2.msra.mxu0 0.0
        %1343 = vmatprep.subr.mxu0 0.0
        %1344 = vmatpush2.msra.mxu0 0.0
        %1345 = vmatprep.subr.mxu0 0.0
        %1346 = vmatpush2.msra.mxu0 0.0
        %1347 = vmatprep.subr.mxu0 0.0
        %1348 = vmatpush2.msra.mxu0 0.0
        %1349 = vmatprep.subr.mxu0 0.0
        %1350 = vmatpush2.msra.mxu0 0.0
        %1351 = vmatprep.subr.mxu0 0.0
        %1352 = vmatpush2.msra.mxu0 0.0
        %1353 = vmatprep.subr.mxu0 0.0
        %1354 = vmatpush2.msra.mxu0 0.0
        %1355 = vmatprep.subr.mxu0 0.0
        %1356 = vmatpush2.msra.mxu0 0.0
        %1357 = vmatprep.subr.mxu0 0.0
        %1358 = vmatpush2.msra.mxu0 0.0
        %1359 = vmatprep.subr.mxu0 0.0
        %1360 = vmatpush2.msra.mxu0 0.0
        %1361 = vmatprep.mubr.f32.mxu0 0.0
        %1362 = vmatmul.mubr.f32.gmra.mxu0 %v1295
        %v1363 = vpop.f32.mrf.mxu0
        %v1364 = vadd.f32 0.0, %v1363
        %v1365 = vpop.f32.mrf.mxu0
        %1366 = vdwg.mxu0
        %1368 = vrot.lane.b32.xlu0 %v1364, 24
        %v1369 = vpop.permute.xlu0 %1368
        %vm1371 = vcmask 261312
        %1372 = vst.msk [vmem:[#allocation3] sm:$0xff] %vm1371, %v1369
        %v1373 = vld [vmem:[#allocation3] sm:$0xff]
        %v1374 = vadd.f32 %v566, %v1373
        %v1375 = vld [vmem:[%s4] sm:$0x1]
        %v1376 = vld [vmem:[%s5] sm:$0x1]
        %v1377 = vsel %vm569, %v1374, 0.0
        %1378 = vadd.xlane.f32.xlu0 %v1377
        %v1379 = vpop.xlane.xlu0 %1378
        %v1380 = vmul.f32 %v1379, %v573
        %v1381 = vsub.f32 %v1374, %v1380
        %v1382 = vmul.f32 %v1381, %v1381
        %v1383 = vsel %vm569, %v1382, 0.0
        %1384 = vadd.xlane.f32.xlu0 %v1383
        %v1385 = vpop.xlane.xlu0 %1384
        %v1386 = vmul.f32 %v1385, %v573
        %v1387 = vadd.f32 %v1386, 1e-05
        %v1388 = vrsqrt.pop %v1387
        %v1389 = vmul.f32 %v1381, %v1388
        %v1391 = vlaneseq
        %v1392 = vshrl.u32 %v1391, 7
        %v1393 = vsub.s32 0, %v1392
        %v1394 = vrot.slane %v1375, %v1393
        %v1396 = vmul.f32 %v1389, %v1394
        %v1398 = vlaneseq
        %v1399 = vshrl.u32 %v1398, 7
        %v1400 = vsub.s32 0, %v1399
        %v1401 = vrot.slane %v1376, %v1400
        %v1403 = vadd.f32 %v1396, %v1401
        %v1404 = vld [vmem:[%s8] sm:$0xff]
        %v1405 = vld [vmem:[%s8 + $0x8] sm:$0xff]
        %v1406 = vld [vmem:[%s8 + $0x10] sm:$0xff]
        %v1407 = vld [vmem:[%s8 + $0x18] sm:$0xff]
        %v1408 = vld [vmem:[%s9] sm:$0x1]
        %v1410 = vlaneseq
        %v1411 = vshrl.u32 %v1410, 7
        %v1412 = vsub.s32 0, %v1411
        %v1413 = vrot.slane %v1408, %v1412
        %v1416 = vsel %vm569, %v1403, 0
        %1418 = vmatprep.subr.mxu0 0.0
        %1419 = vmatpush1.msra.mxu0 0.0
        %1420 = vmatprep.subr.mxu0 0.0
        %1421 = vmatpush1.msra.mxu0 0.0
        %1422 = vmatprep.subr.mxu0 0.0
        %1423 = vmatpush1.msra.mxu0 0.0
        %1424 = vmatprep.subr.mxu0 0.0
        %1425 = vmatpush1.msra.mxu0 0.0
        %1426 = vmatprep.subr.mxu0 0.0
        %1427 = vmatpush1.msra.mxu0 0.0
        %1428 = vmatprep.subr.mxu0 0.0
        %1429 = vmatpush1.msra.mxu0 0.0
        %1430 = vmatprep.subr.mxu0 0.0
        %1431 = vmatpush1.msra.mxu0 0.0
        %1432 = vmatprep.subr.mxu0 0.0
        %1433 = vmatpush1.msra.mxu0 0.0
        %1434 = vmatprep.subr.mxu0 0.0
        %1435 = vmatpush1.msra.mxu0 0.0
        %1436 = vmatprep.subr.mxu0 0.0
        %1437 = vmatpush1.msra.mxu0 0.0
        %1438 = vmatprep.subr.mxu0 0.0
        %1439 = vmatpush1.msra.mxu0 0.0
        %1440 = vmatprep.subr.mxu0 0.0
        %1441 = vmatpush1.msra.mxu0 0.0
        %1442 = vmatprep.subr.mxu0 0.0
        %1443 = vmatpush1.msra.mxu0 %v1407
        %1444 = vmatprep.subr.mxu0 0.0
        %1445 = vmatpush1.msra.mxu0 %v1406
        %1446 = vmatprep.subr.mxu0 0.0
        %1447 = vmatpush1.msra.mxu0 %v1405
        %1448 = vmatprep.subr.mxu0 0.0
        %1449 = vmatpush1.msra.mxu0 %v1404
        %1450 = vmatprep.subr.mxu0 0.0
        %1451 = vmatpush2.msra.mxu0 0.0
        %1452 = vmatprep.subr.mxu0 0.0
        %1453 = vmatpush2.msra.mxu0 0.0
        %1454 = vmatprep.subr.mxu0 0.0
        %1455 = vmatpush2.msra.mxu0 0.0
        %1456 = vmatprep.subr.mxu0 0.0
        %1457 = vmatpush2.msra.mxu0 0.0
        %1458 = vmatprep.subr.mxu0 0.0
        %1459 = vmatpush2.msra.mxu0 0.0
        %1460 = vmatprep.subr.mxu0 0.0
        %1461 = vmatpush2.msra.mxu0 0.0
        %1462 = vmatprep.subr.mxu0 0.0
        %1463 = vmatpush2.msra.mxu0 0.0
        %1464 = vmatprep.subr.mxu0 0.0
        %1465 = vmatpush2.msra.mxu0 0.0
        %1466 = vmatprep.subr.mxu0 0.0
        %1467 = vmatpush2.msra.mxu0 0.0
        %1468 = vmatprep.subr.mxu0 0.0
        %1469 = vmatpush2.msra.mxu0 0.0
        %1470 = vmatprep.subr.mxu0 0.0
        %1471 = vmatpush2.msra.mxu0 0.0
        %1472 = vmatprep.subr.mxu0 0.0
        %1473 = vmatpush2.msra.mxu0 0.0
        %1474 = vmatprep.subr.mxu0 0.0
        %1475 = vmatpush2.msra.mxu0 0.0
        %1476 = vmatprep.subr.mxu0 0.0
        %1477 = vmatpush2.msra.mxu0 0.0
        %1478 = vmatprep.subr.mxu0 0.0
        %1479 = vmatpush2.msra.mxu0 0.0
        %1480 = vmatprep.subr.mxu0 0.0
        %1481 = vmatpush2.msra.mxu0 0.0
        %1482 = vmatprep.mubr.f32.mxu0 0.0
        %1483 = vmatmul.mubr.f32.gmra.mxu0 %v1416
        %v1484 = vpop.f32.mrf.mxu0
        %v1485 = vadd.f32 %v1413, %v1484
        %v1486 = vpop.f32.mrf.mxu0
        %1487 = vdwg.mxu0
        %v1488 = vmax.f32 %v1485, 0.0
        %v1489 = vld [vmem:[%s10] sm:$0xff]
        %v1490 = vld [vmem:[%s10 + $0x8] sm:$0xff]
        %v1491 = vld [vmem:[%s10 + $0x10] sm:$0xff]
        %v1492 = vld [vmem:[%s10 + $0x18] sm:$0xff]
        %v1493 = vld [vmem:[%s10 + $0x20] sm:$0xff]
        %v1494 = vld [vmem:[%s10 + $0x28] sm:$0xff]
        %v1495 = vld [vmem:[%s10 + $0x30] sm:$0xff]
        %v1496 = vld [vmem:[%s10 + $0x38] sm:$0xff]
        %v1497 = vld [vmem:[%s10 + $0x40] sm:$0xff]
        %v1498 = vld [vmem:[%s10 + $0x48] sm:$0xff]
        %v1499 = vld [vmem:[%s10 + $0x50] sm:$0xff]
        %v1500 = vld [vmem:[%s10 + $0x58] sm:$0xff]
        %v1501 = vld [vmem:[%s10 + $0x60] sm:$0xff]
        %v1502 = vld [vmem:[%s10 + $0x68] sm:$0xff]
        %v1503 = vld [vmem:[%s10 + $0x70] sm:$0xff]
        %v1504 = vld [vmem:[%s10 + $0x78] sm:$0xff]
        %v1505 = vld [vmem:[%s11] sm:$0x1]
        %v1507 = vlaneseq
        %v1508 = vshrl.u32 %v1507, 7
        %v1509 = vsub.s32 0, %v1508
        %v1510 = vrot.slane %v1505, %v1509
        %1512 = vmatprep.subr.mxu0 0.0
        %1513 = vmatpush1.msra.mxu0 %v1504
        %1514 = vmatprep.subr.mxu0 0.0
        %1515 = vmatpush1.msra.mxu0 %v1503
        %1516 = vmatprep.subr.mxu0 0.0
        %1517 = vmatpush1.msra.mxu0 %v1502
        %1518 = vmatprep.subr.mxu0 0.0
        %1519 = vmatpush1.msra.mxu0 %v1501
        %1520 = vmatprep.subr.mxu0 0.0
        %1521 = vmatpush1.msra.mxu0 %v1500
        %1522 = vmatprep.subr.mxu0 0.0
        %1523 = vmatpush1.msra.mxu0 %v1499
        %1524 = vmatprep.subr.mxu0 0.0
        %1525 = vmatpush1.msra.mxu0 %v1498
        %1526 = vmatprep.subr.mxu0 0.0
        %1527 = vmatpush1.msra.mxu0 %v1497
        %1528 = vmatprep.subr.mxu0 0.0
        %1529 = vmatpush1.msra.mxu0 %v1496
        %1530 = vmatprep.subr.mxu0 0.0
        %1531 = vmatpush1.msra.mxu0 %v1495
        %1532 = vmatprep.subr.mxu0 0.0
        %1533 = vmatpush1.msra.mxu0 %v1494
        %1534 = vmatprep.subr.mxu0 0.0
        %1535 = vmatpush1.msra.mxu0 %v1493
        %1536 = vmatprep.subr.mxu0 0.0
        %1537 = vmatpush1.msra.mxu0 %v1492
        %1538 = vmatprep.subr.mxu0 0.0
        %1539 = vmatpush1.msra.mxu0 %v1491
        %1540 = vmatprep.subr.mxu0 0.0
        %1541 = vmatpush1.msra.mxu0 %v1490
        %1542 = vmatprep.subr.mxu0 0.0
        %1543 = vmatpush1.msra.mxu0 %v1489
        %1544 = vmatprep.subr.mxu0 0.0
        %1545 = vmatpush2.msra.mxu0 0.0
        %1546 = vmatprep.subr.mxu0 0.0
        %1547 = vmatpush2.msra.mxu0 0.0
        %1548 = vmatprep.subr.mxu0 0.0
        %1549 = vmatpush2.msra.mxu0 0.0
        %1550 = vmatprep.subr.mxu0 0.0
        %1551 = vmatpush2.msra.mxu0 0.0
        %1552 = vmatprep.subr.mxu0 0.0
        %1553 = vmatpush2.msra.mxu0 0.0
        %1554 = vmatprep.subr.mxu0 0.0
        %1555 = vmatpush2.msra.mxu0 0.0
        %1556 = vmatprep.subr.mxu0 0.0
        %1557 = vmatpush2.msra.mxu0 0.0
        %1558 = vmatprep.subr.mxu0 0.0
        %1559 = vmatpush2.msra.mxu0 0.0
        %1560 = vmatprep.subr.mxu0 0.0
        %1561 = vmatpush2.msra.mxu0 0.0
        %1562 = vmatprep.subr.mxu0 0.0
        %1563 = vmatpush2.msra.mxu0 0.0
        %1564 = vmatprep.subr.mxu0 0.0
        %1565 = vmatpush2.msra.mxu0 0.0
        %1566 = vmatprep.subr.mxu0 0.0
        %1567 = vmatpush2.msra.mxu0 0.0
        %1568 = vmatprep.subr.mxu0 0.0
        %1569 = vmatpush2.msra.mxu0 0.0
        %1570 = vmatprep.subr.mxu0 0.0
        %1571 = vmatpush2.msra.mxu0 0.0
        %1572 = vmatprep.subr.mxu0 0.0
        %1573 = vmatpush2.msra.mxu0 0.0
        %1574 = vmatprep.subr.mxu0 0.0
        %1575 = vmatpush2.msra.mxu0 0.0
        %1576 = vmatprep.mubr.f32.mxu0 0.0
        %1577 = vmatmul.mubr.f32.gmra.mxu0 %v1488
        %v1578 = vpop.f32.mrf.mxu0
        %v1579 = vadd.f32 %v1510, %v1578
        %v1580 = vpop.f32.mrf.mxu0
        %1581 = vdwg.mxu0
        %v1582 = vadd.f32 %v1374, %v1579
        %1583 = vst.msk [vmem:[%s439] sm:$0xff] %vm569, %v1582
        %s1584 = sand.u32 %s312, 1
        %s1585 = scalar_lea.sflag [#allocation5], %s1584
        %s1586 = sand.u32 %s312, 1
        %s1587 = smul.addr %s1586, 8
        %s1588 = scalar_lea.vmem [#allocation4], %s1587
        // Predicated region
        $region73: #{tpu_custom_call.1} parent=67 // pred_check
          %p1589 = pneg %p322
        $region74: #{tpu_custom_call.1} parent=67 // pred_check_branch
          %1591 = sbr.rel (%p1589) target = $region76
        $region75: #{tpu_custom_call.1} parent=67 // pred_region
          %s1593 = ssub.s32 128, 128
          %1594 = vsyncadd %s1585, %s1593
          %s1595 = sadd.s32 %s31, %s30
          %s1596 = smul.addr %s1595, 128
          %s1597 = scalar_lea.hbm %s12, %s1596
          %s1599 = sshll.u32 %s1588, 4
          %s1600 = int_to_ptr.vmem [resolvable:$true] %s1599
          %1602 = dma.vmem_to_hbm [thread:$0]  %s1600, 128, %s1597, %s1585
        $region76: #{tpu_custom_call.1} parent=67 // pred_fallthru
          _
      $region68: #{tpu_custom_call.1} parent=5 // pred_fallthru
        _
      %p1603 = scmp.le.s32.totalorder 2, %s21
      // Predicated region
      $region77: #{tpu_custom_call.1} parent=5 // pred_check
        %p1604 = pneg %p1603
      $region78: #{tpu_custom_call.1} parent=5 // pred_check_branch
        %1606 = sbr.rel (%p1604) target = $region80
      $region79: #{tpu_custom_call.1} parent=5 // pred_region
        %s1607 = ssub.s32 %s21, 2
        // Predicated region
        $region81: #{tpu_custom_call.1} parent=79 // pred_check
          %p1608 = pneg %p328
        $region82: #{tpu_custom_call.1} parent=79 // pred_check_branch
          %1610 = sbr.rel (%p1608) target = $region84
        $region83: #{tpu_custom_call.1} parent=79 // pred_region
          %s1611 = sand.u32 %s313, 1
          %s1612 = scalar_lea.sflag [#allocation5], %s1611
          %s1613 = sand.u32 %s313, 1
          %s1614 = smul.addr %s1613, 8
          %s1615 = scalar_lea.vmem [#allocation4], %s1614
          %1616 = dma.done %s1612, 128
        $region84: #{tpu_custom_call.1} parent=79 // pred_fallthru
          _
      $region80: #{tpu_custom_call.1} parent=5 // pred_fallthru
        _
    $region6: #{tpu_custom_call.1} parent=1 // loop_footer
      %s25 = sadd.s32 1, %s21
    $region7: #{tpu_custom_call.1} parent=1 // loop_footer_branch
      %20 = sbr.rel target = $region3
    $region8: #{tpu_custom_call.1} parent=1 // loop_exit
      _
    %1617 = vsyncpa [#allocation5], 1
    %s1618 = scalar_lea.sflag [#allocation5], 1
    %1619 = vsyncpa %s1618, 1

</llo_original>
